<compile_context>
chip_gen: v5e
topology: v5e:2x2
jax: 0.10.0
libtpu: 0.0.40
codegen_flags: <defaults>
</compile_context>

<pallas_src>
import functools
import math

import jax
import jax.numpy as jnp
import numpy as np
from jax import lax
from jax.experimental import pallas as pl
from jax.experimental.pallas import tpu as pltpu


def _shift_flat(a, delta, hw):
    """out[:, f] = a[:, f + delta] if 0 <= f + delta < hw else 0 (static delta)."""
    if delta == 0:
        return a
    c = a.shape[0]
    zeros = jnp.zeros((c, abs(delta)), a.dtype)
    if delta > 0:
        return jnp.concatenate([a[:, delta:], zeros], axis=1)
    return jnp.concatenate([zeros, a[:, :hw + delta]], axis=1)


def _conv3x3(act_bf, w_ref, W, hw, mask_l, mask_r):
    """3x3 SAME conv in (C, HW) layout.

    act_bf : (Cin, HW) bf16 activation (flat y*W + x spatial index).
    w_ref  : (9, Cout, Cin) bf16 weights, tap index t = dy*3 + dx.
    Returns (Cout, HW) float32.
    """
    cout = w_ref.shape[1]
    acc = jnp.zeros((cout, hw), jnp.float32)
    zero = jnp.zeros_like(act_bf)
    for dy in range(3):
        for dx in range(3):
            oy, ox = dy - 1, dx - 1
            shifted = _shift_flat(act_bf, oy * W + ox, hw)
            # Column-edge mask kills the row-wrap artifacts of the flat shift;
            # row edges are already zero-filled by _shift_flat.
            if ox == -1:
                shifted = jnp.where(mask_l, shifted, zero)
            elif ox == 1:
                shifted = jnp.where(mask_r, shifted, zero)
            w_tap = w_ref[dy * 3 + dx]                      # (Cout, Cin) bf16
            acc += jnp.dot(w_tap, shifted,
                           preferred_element_type=jnp.float32)
    return acc


def resblock_kernel(x_ref, w1_ref, b1_ref, w2_ref, b2_ref, o_ref, *, H, W):
    """One batch element per grid step.

    x_ref : (C, HW)       f32 input block (NCHW, batch squeezed, spatial flattened)
    w1_ref: (9, C, C)     conv1 weights, (tap, Cout, Cin), bf16
    b1_ref: (C, 1)        conv1 bias, f32
    w2_ref: (9, C, C)     conv2 weights, bf16
    b2_ref: (C, 1)        conv2 bias, f32
    o_ref : (C, HW)       output block (lane-dense: HW is a multiple of 128)
    """
    C, HW = x_ref.shape

    x = x_ref[...]                                   # reused for the identity add
    x_bf = x.astype(jnp.bfloat16)

    # Destination-column masks (hoisted out of the tap loops).
    colx = lax.broadcasted_iota(jnp.int32, (C, HW), 1) % W
    mask_l = colx >= 1            # valid destinations when ox == -1
    mask_r = colx <= W - 2        # valid destinations when ox == +1

    h = _conv3x3(x_bf, w1_ref, W, HW, mask_l, mask_r)        # (C, HW) f32
    h = jnp.maximum(h + b1_ref[...], 0.0).astype(jnp.bfloat16)

    y = _conv3x3(h, w2_ref, W, HW, mask_l, mask_r)           # (C, HW) f32
    o_ref[...] = (x + y + b2_ref[...]).astype(o_ref.dtype)


def residual_block_nobn(x_nchw, w1, b1, w2, b2):
    """x_nchw: (N, C, H, W); w*: (3, 3, Cin, Cout) HWIO; b*: (C,). Returns (N, C, H, W)."""
    N, C, H, W = x_nchw.shape
    HW = H * W

    # Tap-major (9, Cout, Cin) weights, bf16 operands (f32 accumulation on MXU).
    w1t = jnp.transpose(w1, (0, 1, 3, 2)).reshape(9, C, C).astype(jnp.bfloat16)
    w2t = jnp.transpose(w2, (0, 1, 3, 2)).reshape(9, C, C).astype(jnp.bfloat16)
    b1c = b1.reshape(C, 1).astype(jnp.float32)
    b2c = b2.reshape(C, 1).astype(jnp.float32)

    x = x_nchw.reshape(N, C, HW)          # free: NCHW is already (N, C, H*W)

    out = pl.pallas_call(
        functools.partial(resblock_kernel, H=H, W=W),
        out_shape=jax.ShapeDtypeStruct((N, C, HW), x.dtype),
        grid_spec=pltpu.PrefetchScalarGridSpec(
            num_scalar_prefetch=0,
            grid=(N,),
            in_specs=[
                pl.BlockSpec((None, C, HW), lambda n: (n, 0, 0)),
                pl.BlockSpec((9, C, C), lambda n: (0, 0, 0)),
                pl.BlockSpec((C, 1), lambda n: (0, 0)),
                pl.BlockSpec((9, C, C), lambda n: (0, 0, 0)),
                pl.BlockSpec((C, 1), lambda n: (0, 0)),
            ],
            out_specs=pl.BlockSpec((None, C, HW), lambda n: (n, 0, 0)),
        ),
        compiler_params=pltpu.CompilerParams(
            dimension_semantics=("parallel",)),
    )(x, w1t, b1c, w2t, b2c)

    return out.reshape(N, C, H, W)


def _init_conv_params(key, nf, scale=0.1):
    """kaiming_normal_(a=0, mode='fan_in') * scale, bias = 0 (HWIO layout)."""
    fan_in = nf * 3 * 3
    std = math.sqrt(2.0) / math.sqrt(fan_in)              # gain = sqrt(2)
    w = jax.random.normal(key, (3, 3, nf, nf), jnp.float32) * std * scale
    b = jnp.zeros((nf,), jnp.float32)
    return w, b


def _reference(x_nchw, w1, b1, w2, b2):
    """Pure-JAX f32 reference (NHWC convs) for correctness checking."""
    x = jnp.transpose(x_nchw, (0, 2, 3, 1))
    dn = ("NHWC", "HWIO", "NHWC")
    h = lax.conv_general_dilated(x, w1, (1, 1), "SAME", dimension_numbers=dn)
    h = jnp.maximum(h + b1, 0.0)
    h = lax.conv_general_dilated(h, w2, (1, 1), "SAME", dimension_numbers=dn)
    h = h + b2
    out = x + h
    return jnp.transpose(out, (0, 3, 1, 2))


if __name__ == "__main__":
    nf = 32
    N, H, W = 2, 16, 16

    key = jax.random.PRNGKey(0)
    kx, k1, k2 = jax.random.split(key, 3)
    x = jax.random.normal(kx, (N, nf, H, W), jnp.float32)
    w1, b1 = _init_conv_params(k1, nf, scale=0.1)
    w2, b2 = _init_conv_params(k2, nf, scale=0.1)

    out = residual_block_nobn(x, w1, b1, w2, b2)
    out = jax.block_until_ready(out)

    ref = _reference(x, w1, b1, w2, b2)
    # Tolerance accounts for bf16 matmul operands (f32 accumulation); the
    # identity path is exact f32 and dominates the output magnitude.
    np.testing.assert_allclose(np.asarray(out), np.asarray(ref),
                               rtol=1e-2, atol=2e-3)

    print("KERNEL_OK")
</pallas_src>

<mosaic_0001>
module attributes {stable_mosaic.version = 11 : i64} {
  func.func @resblock_kernel(%arg0: i32, %arg1: memref<1x32x256xf32, #tpu.memory_space<vmem>>, %arg2: memref<9x32x32xbf16, #tpu.memory_space<vmem>>, %arg3: memref<32x1xf32, #tpu.memory_space<vmem>>, %arg4: memref<9x32x32xbf16, #tpu.memory_space<vmem>>, %arg5: memref<32x1xf32, #tpu.memory_space<vmem>>, %arg6: memref<1x32x256xf32, #tpu.memory_space<vmem>>) attributes {dimension_semantics = [#tpu.dimension_semantics<parallel>], iteration_bounds = array<i64: 2>, scalar_prefetch = 0 : i64, scratch_operands = 0 : i64, tpu.core_type = #tpu.core_type<tc>, window_params = [{transform_indices = @transform_0, window_bounds = array<i64: 1, 32, 256>}, {pipeline_mode = #tpu.pipeline_mode<synchronous>, transform_indices = @transform_1, window_bounds = array<i64: 9, 32, 32>}, {pipeline_mode = #tpu.pipeline_mode<synchronous>, transform_indices = @transform_2, window_bounds = array<i64: 32, 1>}, {pipeline_mode = #tpu.pipeline_mode<synchronous>, transform_indices = @transform_3, window_bounds = array<i64: 9, 32, 32>}, {pipeline_mode = #tpu.pipeline_mode<synchronous>, transform_indices = @transform_4, window_bounds = array<i64: 32, 1>}, {transform_indices = @transform_5, window_bounds = array<i64: 1, 32, 256>}]} {
    %c0 = arith.constant 0 : index
    %c0_0 = arith.constant 0 : index
    %c0_1 = arith.constant 0 : index
    %0 = vector.load %arg1[%c0, %c0_0, %c0_1] : memref<1x32x256xf32, #tpu.memory_space<vmem>>, vector<1x32x256xf32>
    %1 = vector.shape_cast %0 : vector<1x32x256xf32> to vector<32x256xf32>
    %2 = arith.truncf %1 : vector<32x256xf32> to vector<32x256xbf16>
    %3 = tpu.iota {dimensions = array<i32: 1>} : vector<32x256xi32>
    %c16_i32 = arith.constant 16 : i32
    %c0_i32 = arith.constant 0 : i32
    %4 = arith.cmpi eq, %c16_i32, %c0_i32 : i32
    %c1_i32 = arith.constant 1 : i32
    %5 = arith.select %4, %c1_i32, %c16_i32 : i32
    %6 = vector.broadcast %5 : i32 to vector<32x256xi32>
    %7 = arith.remsi %3, %6 : vector<32x256xi32>
    %c0_i32_2 = arith.constant 0 : i32
    %8 = vector.broadcast %c0_i32_2 : i32 to vector<32x256xi32>
    %9 = arith.cmpi ne, %7, %8 : vector<32x256xi32>
    %c0_i32_3 = arith.constant 0 : i32
    %10 = vector.broadcast %c0_i32_3 : i32 to vector<32x256xi32>
    %11 = arith.cmpi slt, %7, %10 : vector<32x256xi32>
    %c0_i32_4 = arith.constant 0 : i32
    %12 = arith.cmpi slt, %5, %c0_i32_4 : i32
    %13 = vector.broadcast %12 : i1 to vector<32x256xi1>
    %14 = vector.broadcast %13 : vector<32x256xi1> to vector<32x256xi1>
    %15 = arith.xori %11, %14 : vector<32x256xi1>
    %16 = arith.andi %15, %9 : vector<32x256xi1>
    %17 = vector.broadcast %5 : i32 to vector<32x256xi32>
    %18 = arith.addi %7, %17 : vector<32x256xi32>
    %19 = arith.select %16, %18, %7 : vector<32x256xi1>, vector<32x256xi32>
    %c1_i32_5 = arith.constant 1 : i32
    %20 = vector.broadcast %c1_i32_5 : i32 to vector<32x256xi32>
    %21 = arith.cmpi sge, %19, %20 : vector<32x256xi32>
    %c14_i32 = arith.constant 14 : i32
    %22 = vector.broadcast %c14_i32 : i32 to vector<32x256xi32>
    %23 = arith.cmpi sle, %19, %22 : vector<32x256xi32>
    %cst = arith.constant 0.000000e+00 : f32
    %24 = vector.broadcast %cst : f32 to vector<32x256xf32>
    %cst_6 = arith.constant 0.000000e+00 : bf16
    %25 = vector.broadcast %cst_6 : bf16 to vector<32x256xbf16>
    %cst_7 = arith.constant 0.000000e+00 : bf16
    %26 = vector.broadcast %cst_7 : bf16 to vector<32x17xbf16>
    %27 = vector.extract_strided_slice %2 {offsets = [0, 0], sizes = [32, 239], strides = [1, 1]} : vector<32x256xbf16> to vector<32x239xbf16>
    %28 = tpu.concatenate %26, %27 in 1 : vector<32x17xbf16>, vector<32x239xbf16> -> vector<32x256xbf16>
    %29 = arith.select %21, %28, %25 : vector<32x256xi1>, vector<32x256xbf16>
    %c0_8 = arith.constant 0 : index
    %c0_9 = arith.constant 0 : index
    %c0_10 = arith.constant 0 : index
    %30 = vector.load %arg2[%c0_8, %c0_9, %c0_10] : memref<9x32x32xbf16, #tpu.memory_space<vmem>>, vector<1x32x32xbf16>
    %31 = vector.shape_cast %30 : vector<1x32x32xbf16> to vector<32x32xbf16>
    %cst_11 = arith.constant dense<0.000000e+00> : vector<32x256xf32>
    %32 = tpu.matmul %31, %29, %cst_11 {dimension_numbers = #tpu.dot_dimension_numbers<[1], [0], [0], [1], [0, 0, 1, 1], [], []>} : vector<32x32xbf16>, vector<32x256xbf16>, vector<32x256xf32> -> vector<32x256xf32>
    %33 = arith.addf %24, %32 : vector<32x256xf32>
    %cst_12 = arith.constant 0.000000e+00 : bf16
    %34 = vector.broadcast %cst_12 : bf16 to vector<32x16xbf16>
    %35 = vector.extract_strided_slice %2 {offsets = [0, 0], sizes = [32, 240], strides = [1, 1]} : vector<32x256xbf16> to vector<32x240xbf16>
    %36 = tpu.concatenate %34, %35 in 1 : vector<32x16xbf16>, vector<32x240xbf16> -> vector<32x256xbf16>
    %c1 = arith.constant 1 : index
    %c0_13 = arith.constant 0 : index
    %c0_14 = arith.constant 0 : index
    %37 = vector.load %arg2[%c1, %c0_13, %c0_14] : memref<9x32x32xbf16, #tpu.memory_space<vmem>>, vector<1x32x32xbf16>
    %38 = vector.shape_cast %37 : vector<1x32x32xbf16> to vector<32x32xbf16>
    %cst_15 = arith.constant dense<0.000000e+00> : vector<32x256xf32>
    %39 = tpu.matmul %38, %36, %cst_15 {dimension_numbers = #tpu.dot_dimension_numbers<[1], [0], [0], [1], [0, 0, 1, 1], [], []>} : vector<32x32xbf16>, vector<32x256xbf16>, vector<32x256xf32> -> vector<32x256xf32>
    %40 = arith.addf %33, %39 : vector<32x256xf32>
    %cst_16 = arith.constant 0.000000e+00 : bf16
    %41 = vector.broadcast %cst_16 : bf16 to vector<32x15xbf16>
    %42 = vector.extract_strided_slice %2 {offsets = [0, 0], sizes = [32, 241], strides = [1, 1]} : vector<32x256xbf16> to vector<32x241xbf16>
    %43 = tpu.concatenate %41, %42 in 1 : vector<32x15xbf16>, vector<32x241xbf16> -> vector<32x256xbf16>
    %44 = arith.select %23, %43, %25 : vector<32x256xi1>, vector<32x256xbf16>
    %c2 = arith.constant 2 : index
    %c0_17 = arith.constant 0 : index
    %c0_18 = arith.constant 0 : index
    %45 = vector.load %arg2[%c2, %c0_17, %c0_18] : memref<9x32x32xbf16, #tpu.memory_space<vmem>>, vector<1x32x32xbf16>
    %46 = vector.shape_cast %45 : vector<1x32x32xbf16> to vector<32x32xbf16>
    %cst_19 = arith.constant dense<0.000000e+00> : vector<32x256xf32>
    %47 = tpu.matmul %46, %44, %cst_19 {dimension_numbers = #tpu.dot_dimension_numbers<[1], [0], [0], [1], [0, 0, 1, 1], [], []>} : vector<32x32xbf16>, vector<32x256xbf16>, vector<32x256xf32> -> vector<32x256xf32>
    %48 = arith.addf %40, %47 : vector<32x256xf32>
    %cst_20 = arith.constant 0.000000e+00 : bf16
    %49 = vector.broadcast %cst_20 : bf16 to vector<32x1xbf16>
    %50 = vector.extract_strided_slice %2 {offsets = [0, 0], sizes = [32, 255], strides = [1, 1]} : vector<32x256xbf16> to vector<32x255xbf16>
    %51 = tpu.concatenate %49, %50 in 1 : vector<32x1xbf16>, vector<32x255xbf16> -> vector<32x256xbf16>
    %52 = arith.select %21, %51, %25 : vector<32x256xi1>, vector<32x256xbf16>
    %c3 = arith.constant 3 : index
    %c0_21 = arith.constant 0 : index
    %c0_22 = arith.constant 0 : index
    %53 = vector.load %arg2[%c3, %c0_21, %c0_22] : memref<9x32x32xbf16, #tpu.memory_space<vmem>>, vector<1x32x32xbf16>
    %54 = vector.shape_cast %53 : vector<1x32x32xbf16> to vector<32x32xbf16>
    %cst_23 = arith.constant dense<0.000000e+00> : vector<32x256xf32>
    %55 = tpu.matmul %54, %52, %cst_23 {dimension_numbers = #tpu.dot_dimension_numbers<[1], [0], [0], [1], [0, 0, 1, 1], [], []>} : vector<32x32xbf16>, vector<32x256xbf16>, vector<32x256xf32> -> vector<32x256xf32>
    %56 = arith.addf %48, %55 : vector<32x256xf32>
    %c4 = arith.constant 4 : index
    %c0_24 = arith.constant 0 : index
    %c0_25 = arith.constant 0 : index
    %57 = vector.load %arg2[%c4, %c0_24, %c0_25] : memref<9x32x32xbf16, #tpu.memory_space<vmem>>, vector<1x32x32xbf16>
    %58 = vector.shape_cast %57 : vector<1x32x32xbf16> to vector<32x32xbf16>
    %cst_26 = arith.constant dense<0.000000e+00> : vector<32x256xf32>
    %59 = tpu.matmul %58, %2, %cst_26 {dimension_numbers = #tpu.dot_dimension_numbers<[1], [0], [0], [1], [0, 0, 1, 1], [], []>} : vector<32x32xbf16>, vector<32x256xbf16>, vector<32x256xf32> -> vector<32x256xf32>
    %60 = arith.addf %56, %59 : vector<32x256xf32>
    %cst_27 = arith.constant 0.000000e+00 : bf16
    %61 = vector.broadcast %cst_27 : bf16 to vector<32x1xbf16>
    %62 = vector.extract_strided_slice %2 {offsets = [0, 1], sizes = [32, 255], strides = [1, 1]} : vector<32x256xbf16> to vector<32x255xbf16>
    %63 = tpu.concatenate %62, %61 in 1 : vector<32x255xbf16>, vector<32x1xbf16> -> vector<32x256xbf16>
    %64 = arith.select %23, %63, %25 : vector<32x256xi1>, vector<32x256xbf16>
    %c5 = arith.constant 5 : index
    %c0_28 = arith.constant 0 : index
    %c0_29 = arith.constant 0 : index
    %65 = vector.load %arg2[%c5, %c0_28, %c0_29] : memref<9x32x32xbf16, #tpu.memory_space<vmem>>, vector<1x32x32xbf16>
    %66 = vector.shape_cast %65 : vector<1x32x32xbf16> to vector<32x32xbf16>
    %cst_30 = arith.constant dense<0.000000e+00> : vector<32x256xf32>
    %67 = tpu.matmul %66, %64, %cst_30 {dimension_numbers = #tpu.dot_dimension_numbers<[1], [0], [0], [1], [0, 0, 1, 1], [], []>} : vector<32x32xbf16>, vector<32x256xbf16>, vector<32x256xf32> -> vector<32x256xf32>
    %68 = arith.addf %60, %67 : vector<32x256xf32>
    %cst_31 = arith.constant 0.000000e+00 : bf16
    %69 = vector.broadcast %cst_31 : bf16 to vector<32x15xbf16>
    %70 = vector.extract_strided_slice %2 {offsets = [0, 15], sizes = [32, 241], strides = [1, 1]} : vector<32x256xbf16> to vector<32x241xbf16>
    %71 = tpu.concatenate %70, %69 in 1 : vector<32x241xbf16>, vector<32x15xbf16> -> vector<32x256xbf16>
    %72 = arith.select %21, %71, %25 : vector<32x256xi1>, vector<32x256xbf16>
    %c6 = arith.constant 6 : index
    %c0_32 = arith.constant 0 : index
    %c0_33 = arith.constant 0 : index
    %73 = vector.load %arg2[%c6, %c0_32, %c0_33] : memref<9x32x32xbf16, #tpu.memory_space<vmem>>, vector<1x32x32xbf16>
    %74 = vector.shape_cast %73 : vector<1x32x32xbf16> to vector<32x32xbf16>
    %cst_34 = arith.constant dense<0.000000e+00> : vector<32x256xf32>
    %75 = tpu.matmul %74, %72, %cst_34 {dimension_numbers = #tpu.dot_dimension_numbers<[1], [0], [0], [1], [0, 0, 1, 1], [], []>} : vector<32x32xbf16>, vector<32x256xbf16>, vector<32x256xf32> -> vector<32x256xf32>
    %76 = arith.addf %68, %75 : vector<32x256xf32>
    %cst_35 = arith.constant 0.000000e+00 : bf16
    %77 = vector.broadcast %cst_35 : bf16 to vector<32x16xbf16>
    %78 = vector.extract_strided_slice %2 {offsets = [0, 16], sizes = [32, 240], strides = [1, 1]} : vector<32x256xbf16> to vector<32x240xbf16>
    %79 = tpu.concatenate %78, %77 in 1 : vector<32x240xbf16>, vector<32x16xbf16> -> vector<32x256xbf16>
    %c7 = arith.constant 7 : index
    %c0_36 = arith.constant 0 : index
    %c0_37 = arith.constant 0 : index
    %80 = vector.load %arg2[%c7, %c0_36, %c0_37] : memref<9x32x32xbf16, #tpu.memory_space<vmem>>, vector<1x32x32xbf16>
    %81 = vector.shape_cast %80 : vector<1x32x32xbf16> to vector<32x32xbf16>
    %cst_38 = arith.constant dense<0.000000e+00> : vector<32x256xf32>
    %82 = tpu.matmul %81, %79, %cst_38 {dimension_numbers = #tpu.dot_dimension_numbers<[1], [0], [0], [1], [0, 0, 1, 1], [], []>} : vector<32x32xbf16>, vector<32x256xbf16>, vector<32x256xf32> -> vector<32x256xf32>
    %83 = arith.addf %76, %82 : vector<32x256xf32>
    %cst_39 = arith.constant 0.000000e+00 : bf16
    %84 = vector.broadcast %cst_39 : bf16 to vector<32x17xbf16>
    %85 = vector.extract_strided_slice %2 {offsets = [0, 17], sizes = [32, 239], strides = [1, 1]} : vector<32x256xbf16> to vector<32x239xbf16>
    %86 = tpu.concatenate %85, %84 in 1 : vector<32x239xbf16>, vector<32x17xbf16> -> vector<32x256xbf16>
    %87 = arith.select %23, %86, %25 : vector<32x256xi1>, vector<32x256xbf16>
    %c8 = arith.constant 8 : index
    %c0_40 = arith.constant 0 : index
    %c0_41 = arith.constant 0 : index
    %88 = vector.load %arg2[%c8, %c0_40, %c0_41] : memref<9x32x32xbf16, #tpu.memory_space<vmem>>, vector<1x32x32xbf16>
    %89 = vector.shape_cast %88 : vector<1x32x32xbf16> to vector<32x32xbf16>
    %cst_42 = arith.constant dense<0.000000e+00> : vector<32x256xf32>
    %90 = tpu.matmul %89, %87, %cst_42 {dimension_numbers = #tpu.dot_dimension_numbers<[1], [0], [0], [1], [0, 0, 1, 1], [], []>} : vector<32x32xbf16>, vector<32x256xbf16>, vector<32x256xf32> -> vector<32x256xf32>
    %91 = arith.addf %83, %90 : vector<32x256xf32>
    %c0_43 = arith.constant 0 : index
    %c0_44 = arith.constant 0 : index
    %92 = vector.load %arg3[%c0_43, %c0_44] : memref<32x1xf32, #tpu.memory_space<vmem>>, vector<32x1xf32>
    %93 = vector.broadcast %92 : vector<32x1xf32> to vector<32x256xf32>
    %94 = arith.addf %91, %93 : vector<32x256xf32>
    %cst_45 = arith.constant 0.000000e+00 : f32
    %95 = vector.broadcast %cst_45 : f32 to vector<32x256xf32>
    %96 = arith.maximumf %94, %95 : vector<32x256xf32>
    %97 = arith.truncf %96 : vector<32x256xf32> to vector<32x256xbf16>
    %cst_46 = arith.constant 0.000000e+00 : f32
    %98 = vector.broadcast %cst_46 : f32 to vector<32x256xf32>
    %cst_47 = arith.constant 0.000000e+00 : bf16
    %99 = vector.broadcast %cst_47 : bf16 to vector<32x256xbf16>
    %cst_48 = arith.constant 0.000000e+00 : bf16
    %100 = vector.broadcast %cst_48 : bf16 to vector<32x17xbf16>
    %101 = vector.extract_strided_slice %97 {offsets = [0, 0], sizes = [32, 239], strides = [1, 1]} : vector<32x256xbf16> to vector<32x239xbf16>
    %102 = tpu.concatenate %100, %101 in 1 : vector<32x17xbf16>, vector<32x239xbf16> -> vector<32x256xbf16>
    %103 = arith.select %21, %102, %99 : vector<32x256xi1>, vector<32x256xbf16>
    %c0_49 = arith.constant 0 : index
    %c0_50 = arith.constant 0 : index
    %c0_51 = arith.constant 0 : index
    %104 = vector.load %arg4[%c0_49, %c0_50, %c0_51] : memref<9x32x32xbf16, #tpu.memory_space<vmem>>, vector<1x32x32xbf16>
    %105 = vector.shape_cast %104 : vector<1x32x32xbf16> to vector<32x32xbf16>
    %cst_52 = arith.constant dense<0.000000e+00> : vector<32x256xf32>
    %106 = tpu.matmul %105, %103, %cst_52 {dimension_numbers = #tpu.dot_dimension_numbers<[1], [0], [0], [1], [0, 0, 1, 1], [], []>} : vector<32x32xbf16>, vector<32x256xbf16>, vector<32x256xf32> -> vector<32x256xf32>
    %107 = arith.addf %98, %106 : vector<32x256xf32>
    %cst_53 = arith.constant 0.000000e+00 : bf16
    %108 = vector.broadcast %cst_53 : bf16 to vector<32x16xbf16>
    %109 = vector.extract_strided_slice %97 {offsets = [0, 0], sizes = [32, 240], strides = [1, 1]} : vector<32x256xbf16> to vector<32x240xbf16>
    %110 = tpu.concatenate %108, %109 in 1 : vector<32x16xbf16>, vector<32x240xbf16> -> vector<32x256xbf16>
    %c1_54 = arith.constant 1 : index
    %c0_55 = arith.constant 0 : index
    %c0_56 = arith.constant 0 : index
    %111 = vector.load %arg4[%c1_54, %c0_55, %c0_56] : memref<9x32x32xbf16, #tpu.memory_space<vmem>>, vector<1x32x32xbf16>
    %112 = vector.shape_cast %111 : vector<1x32x32xbf16> to vector<32x32xbf16>
    %cst_57 = arith.constant dense<0.000000e+00> : vector<32x256xf32>
    %113 = tpu.matmul %112, %110, %cst_57 {dimension_numbers = #tpu.dot_dimension_numbers<[1], [0], [0], [1], [0, 0, 1, 1], [], []>} : vector<32x32xbf16>, vector<32x256xbf16>, vector<32x256xf32> -> vector<32x256xf32>
    %114 = arith.addf %107, %113 : vector<32x256xf32>
    %cst_58 = arith.constant 0.000000e+00 : bf16
    %115 = vector.broadcast %cst_58 : bf16 to vector<32x15xbf16>
    %116 = vector.extract_strided_slice %97 {offsets = [0, 0], sizes = [32, 241], strides = [1, 1]} : vector<32x256xbf16> to vector<32x241xbf16>
    %117 = tpu.concatenate %115, %116 in 1 : vector<32x15xbf16>, vector<32x241xbf16> -> vector<32x256xbf16>
    %118 = arith.select %23, %117, %99 : vector<32x256xi1>, vector<32x256xbf16>
    %c2_59 = arith.constant 2 : index
    %c0_60 = arith.constant 0 : index
    %c0_61 = arith.constant 0 : index
    %119 = vector.load %arg4[%c2_59, %c0_60, %c0_61] : memref<9x32x32xbf16, #tpu.memory_space<vmem>>, vector<1x32x32xbf16>
    %120 = vector.shape_cast %119 : vector<1x32x32xbf16> to vector<32x32xbf16>
    %cst_62 = arith.constant dense<0.000000e+00> : vector<32x256xf32>
    %121 = tpu.matmul %120, %118, %cst_62 {dimension_numbers = #tpu.dot_dimension_numbers<[1], [0], [0], [1], [0, 0, 1, 1], [], []>} : vector<32x32xbf16>, vector<32x256xbf16>, vector<32x256xf32> -> vector<32x256xf32>
    %122 = arith.addf %114, %121 : vector<32x256xf32>
    %cst_63 = arith.constant 0.000000e+00 : bf16
    %123 = vector.broadcast %cst_63 : bf16 to vector<32x1xbf16>
    %124 = vector.extract_strided_slice %97 {offsets = [0, 0], sizes = [32, 255], strides = [1, 1]} : vector<32x256xbf16> to vector<32x255xbf16>
    %125 = tpu.concatenate %123, %124 in 1 : vector<32x1xbf16>, vector<32x255xbf16> -> vector<32x256xbf16>
    %126 = arith.select %21, %125, %99 : vector<32x256xi1>, vector<32x256xbf16>
    %c3_64 = arith.constant 3 : index
    %c0_65 = arith.constant 0 : index
    %c0_66 = arith.constant 0 : index
    %127 = vector.load %arg4[%c3_64, %c0_65, %c0_66] : memref<9x32x32xbf16, #tpu.memory_space<vmem>>, vector<1x32x32xbf16>
    %128 = vector.shape_cast %127 : vector<1x32x32xbf16> to vector<32x32xbf16>
    %cst_67 = arith.constant dense<0.000000e+00> : vector<32x256xf32>
    %129 = tpu.matmul %128, %126, %cst_67 {dimension_numbers = #tpu.dot_dimension_numbers<[1], [0], [0], [1], [0, 0, 1, 1], [], []>} : vector<32x32xbf16>, vector<32x256xbf16>, vector<32x256xf32> -> vector<32x256xf32>
    %130 = arith.addf %122, %129 : vector<32x256xf32>
    %c4_68 = arith.constant 4 : index
    %c0_69 = arith.constant 0 : index
    %c0_70 = arith.constant 0 : index
    %131 = vector.load %arg4[%c4_68, %c0_69, %c0_70] : memref<9x32x32xbf16, #tpu.memory_space<vmem>>, vector<1x32x32xbf16>
    %132 = vector.shape_cast %131 : vector<1x32x32xbf16> to vector<32x32xbf16>
    %cst_71 = arith.constant dense<0.000000e+00> : vector<32x256xf32>
    %133 = tpu.matmul %132, %97, %cst_71 {dimension_numbers = #tpu.dot_dimension_numbers<[1], [0], [0], [1], [0, 0, 1, 1], [], []>} : vector<32x32xbf16>, vector<32x256xbf16>, vector<32x256xf32> -> vector<32x256xf32>
    %134 = arith.addf %130, %133 : vector<32x256xf32>
    %cst_72 = arith.constant 0.000000e+00 : bf16
    %135 = vector.broadcast %cst_72 : bf16 to vector<32x1xbf16>
    %136 = vector.extract_strided_slice %97 {offsets = [0, 1], sizes = [32, 255], strides = [1, 1]} : vector<32x256xbf16> to vector<32x255xbf16>
    %137 = tpu.concatenate %136, %135 in 1 : vector<32x255xbf16>, vector<32x1xbf16> -> vector<32x256xbf16>
    %138 = arith.select %23, %137, %99 : vector<32x256xi1>, vector<32x256xbf16>
    %c5_73 = arith.constant 5 : index
    %c0_74 = arith.constant 0 : index
    %c0_75 = arith.constant 0 : index
    %139 = vector.load %arg4[%c5_73, %c0_74, %c0_75] : memref<9x32x32xbf16, #tpu.memory_space<vmem>>, vector<1x32x32xbf16>
    %140 = vector.shape_cast %139 : vector<1x32x32xbf16> to vector<32x32xbf16>
    %cst_76 = arith.constant dense<0.000000e+00> : vector<32x256xf32>
    %141 = tpu.matmul %140, %138, %cst_76 {dimension_numbers = #tpu.dot_dimension_numbers<[1], [0], [0], [1], [0, 0, 1, 1], [], []>} : vector<32x32xbf16>, vector<32x256xbf16>, vector<32x256xf32> -> vector<32x256xf32>
    %142 = arith.addf %134, %141 : vector<32x256xf32>
    %cst_77 = arith.constant 0.000000e+00 : bf16
    %143 = vector.broadcast %cst_77 : bf16 to vector<32x15xbf16>
    %144 = vector.extract_strided_slice %97 {offsets = [0, 15], sizes = [32, 241], strides = [1, 1]} : vector<32x256xbf16> to vector<32x241xbf16>
    %145 = tpu.concatenate %144, %143 in 1 : vector<32x241xbf16>, vector<32x15xbf16> -> vector<32x256xbf16>
    %146 = arith.select %21, %145, %99 : vector<32x256xi1>, vector<32x256xbf16>
    %c6_78 = arith.constant 6 : index
    %c0_79 = arith.constant 0 : index
    %c0_80 = arith.constant 0 : index
    %147 = vector.load %arg4[%c6_78, %c0_79, %c0_80] : memref<9x32x32xbf16, #tpu.memory_space<vmem>>, vector<1x32x32xbf16>
    %148 = vector.shape_cast %147 : vector<1x32x32xbf16> to vector<32x32xbf16>
    %cst_81 = arith.constant dense<0.000000e+00> : vector<32x256xf32>
    %149 = tpu.matmul %148, %146, %cst_81 {dimension_numbers = #tpu.dot_dimension_numbers<[1], [0], [0], [1], [0, 0, 1, 1], [], []>} : vector<32x32xbf16>, vector<32x256xbf16>, vector<32x256xf32> -> vector<32x256xf32>
    %150 = arith.addf %142, %149 : vector<32x256xf32>
    %cst_82 = arith.constant 0.000000e+00 : bf16
    %151 = vector.broadcast %cst_82 : bf16 to vector<32x16xbf16>
    %152 = vector.extract_strided_slice %97 {offsets = [0, 16], sizes = [32, 240], strides = [1, 1]} : vector<32x256xbf16> to vector<32x240xbf16>
    %153 = tpu.concatenate %152, %151 in 1 : vector<32x240xbf16>, vector<32x16xbf16> -> vector<32x256xbf16>
    %c7_83 = arith.constant 7 : index
    %c0_84 = arith.constant 0 : index
    %c0_85 = arith.constant 0 : index
    %154 = vector.load %arg4[%c7_83, %c0_84, %c0_85] : memref<9x32x32xbf16, #tpu.memory_space<vmem>>, vector<1x32x32xbf16>
    %155 = vector.shape_cast %154 : vector<1x32x32xbf16> to vector<32x32xbf16>
    %cst_86 = arith.constant dense<0.000000e+00> : vector<32x256xf32>
    %156 = tpu.matmul %155, %153, %cst_86 {dimension_numbers = #tpu.dot_dimension_numbers<[1], [0], [0], [1], [0, 0, 1, 1], [], []>} : vector<32x32xbf16>, vector<32x256xbf16>, vector<32x256xf32> -> vector<32x256xf32>
    %157 = arith.addf %150, %156 : vector<32x256xf32>
    %cst_87 = arith.constant 0.000000e+00 : bf16
    %158 = vector.broadcast %cst_87 : bf16 to vector<32x17xbf16>
    %159 = vector.extract_strided_slice %97 {offsets = [0, 17], sizes = [32, 239], strides = [1, 1]} : vector<32x256xbf16> to vector<32x239xbf16>
    %160 = tpu.concatenate %159, %158 in 1 : vector<32x239xbf16>, vector<32x17xbf16> -> vector<32x256xbf16>
    %161 = arith.select %23, %160, %99 : vector<32x256xi1>, vector<32x256xbf16>
    %c8_88 = arith.constant 8 : index
    %c0_89 = arith.constant 0 : index
    %c0_90 = arith.constant 0 : index
    %162 = vector.load %arg4[%c8_88, %c0_89, %c0_90] : memref<9x32x32xbf16, #tpu.memory_space<vmem>>, vector<1x32x32xbf16>
    %163 = vector.shape_cast %162 : vector<1x32x32xbf16> to vector<32x32xbf16>
    %cst_91 = arith.constant dense<0.000000e+00> : vector<32x256xf32>
    %164 = tpu.matmul %163, %161, %cst_91 {dimension_numbers = #tpu.dot_dimension_numbers<[1], [0], [0], [1], [0, 0, 1, 1], [], []>} : vector<32x32xbf16>, vector<32x256xbf16>, vector<32x256xf32> -> vector<32x256xf32>
    %165 = arith.addf %157, %164 : vector<32x256xf32>
    %166 = arith.addf %1, %165 : vector<32x256xf32>
    %c0_92 = arith.constant 0 : index
    %c0_93 = arith.constant 0 : index
    %167 = vector.load %arg5[%c0_92, %c0_93] : memref<32x1xf32, #tpu.memory_space<vmem>>, vector<32x1xf32>
    %168 = vector.broadcast %167 : vector<32x1xf32> to vector<32x256xf32>
    %169 = arith.addf %166, %168 : vector<32x256xf32>
    %c0_94 = arith.constant 0 : index
    %c0_95 = arith.constant 0 : index
    %c0_96 = arith.constant 0 : index
    %170 = vector.load %arg6[%c0_94, %c0_95, %c0_96] : memref<1x32x256xf32, #tpu.memory_space<vmem>>, vector<1x32x256xf32>
    %171 = vector.shape_cast %170 : vector<1x32x256xf32> to vector<32x256xf32>
    %172 = vector.shape_cast %169 : vector<32x256xf32> to vector<1x32x256xf32>
    tpu.vector_store %arg6[%c0_94, %c0_95, %c0_96], %172 {strides = array<i32>} : memref<1x32x256xf32, #tpu.memory_space<vmem>>, vector<1x32x256xf32>,
    return
  }
  func.func @transform_0(%arg0: i32) -> (i32, i32, i32) {
    %c0_i32 = arith.constant 0 : i32
    %c0_i32_0 = arith.constant 0 : i32
    %c0_i32_1 = arith.constant 0 : i32
    return %arg0, %c0_i32, %c0_i32_0 : i32, i32, i32
  }
  func.func @transform_1(%arg0: i32) -> (i32, i32, i32) {
    %c0_i32 = arith.constant 0 : i32
    %c0_i32_0 = arith.constant 0 : i32
    %c0_i32_1 = arith.constant 0 : i32
    %c0_i32_2 = arith.constant 0 : i32
    return %c0_i32, %c0_i32_0, %c0_i32_1 : i32, i32, i32
  }
  func.func @transform_2(%arg0: i32) -> (i32, i32) {
    %c0_i32 = arith.constant 0 : i32
    %c0_i32_0 = arith.constant 0 : i32
    %c0_i32_1 = arith.constant 0 : i32
    return %c0_i32, %c0_i32_0 : i32, i32
  }
  func.func @transform_3(%arg0: i32) -> (i32, i32, i32) {
    %c0_i32 = arith.constant 0 : i32
    %c0_i32_0 = arith.constant 0 : i32
    %c0_i32_1 = arith.constant 0 : i32
    %c0_i32_2 = arith.constant 0 : i32
    return %c0_i32, %c0_i32_0, %c0_i32_1 : i32, i32, i32
  }
  func.func @transform_4(%arg0: i32) -> (i32, i32) {
    %c0_i32 = arith.constant 0 : i32
    %c0_i32_0 = arith.constant 0 : i32
    %c0_i32_1 = arith.constant 0 : i32
    return %c0_i32, %c0_i32_0 : i32, i32
  }
  func.func @transform_5(%arg0: i32) -> (i32, i32, i32) {
    %c0_i32 = arith.constant 0 : i32
    %c0_i32_0 = arith.constant 0 : i32
    %c0_i32_1 = arith.constant 0 : i32
    return %arg0, %c0_i32, %c0_i32_0 : i32, i32, i32
  }
}

</mosaic_0001>

<llo_original>
// kernel: tpu_custom_call.1
$region0: #{tpu_custom_call.1}
  #allocation0 [shape = 'u32[]', space=smem, size = 0x4, offset = 0x4, fixed_abs, tag = 'smem constant byte address 0x4 - core index']
  #allocation1 [shape = 'u32[72,128]{1,0:T(1,128)}', space=vmem, size = 0x9000, scoped, tag = 'internal scratch']
  %s0 = inlined_call_operand.hbm [shape: f32[2,32,256], index: 0, kind: input, shape index: {}]
  %s1 = inlined_call_operand.hbm [shape: bf16[9,32,32], index: 1, kind: input, shape index: {}]
  %s2 = inlined_call_operand.vmem [shape: f32[32,1], index: 2, kind: input, shape index: {}]
  %s3 = inlined_call_operand.hbm [shape: bf16[9,32,32], index: 3, kind: input, shape index: {}]
  %s4 = inlined_call_operand.vmem [shape: f32[32,1], index: 4, kind: input, shape index: {}]
  %s5 = inlined_call_operand.hbm [shape: f32[2,32,256], index: 5, kind: output, shape index: {}]
  %s6 = sld [smem:[#allocation0]]
  $region65: #{tpu_custom_call.1} parent=0
    _
  %s8 = ssub.s32 1, %s6
  %s9 = scalar_select 0, %s8, %s6
  $region1: #{tpu_custom_call.1} parent=0
    #allocation2 [shape = 'u8[65536]{0}', space=vmem, size = 0x10000, scoped, tag = 'input window, operand 0']
    #allocation3 [shape = 's32[2]{0}', space=sflag, size = 0x8, scoped, tag = 'scoped memory for tpu_custom_call.1']
    #allocation4 [shape = 's32[2]{0}', space=sflag, size = 0x8, scoped, tag = 'scoped memory for tpu_custom_call.1']
    #allocation5 [shape = 'u8[73728]{0}', space=vmem, size = 0x12000, scoped, tag = 'input window, operand 1, single buffered']
    #allocation6 [shape = 's32[1]{0}', space=sflag, size = 0x4, scoped, tag = 'scoped memory for tpu_custom_call.1']
    #allocation7 [shape = 'u8[73728]{0}', space=vmem, size = 0x12000, scoped, tag = 'input window, operand 3, single buffered']
    #allocation8 [shape = 'u8[65536]{0}', space=vmem, size = 0x10000, scoped, tag = 'output window, operand 0']
    %10 = vsyncpa [#allocation3], 0
    %s11 = scalar_lea.sflag [#allocation3], 1
    %12 = vsyncpa %s11, 0
    %13 = vsyncpa [#allocation6], 0
    %14 = vsyncpa [#allocation4], 0
    %s15 = scalar_lea.sflag [#allocation4], 1
    %16 = vsyncpa %s15, 0
    loop: start=0, step=1, limit=4
    $region2: #{tpu_custom_call.1} parent=1 // loop_pre_header
      _
    $region3: #{tpu_custom_call.1} parent=1 // loop_header
      %s18 = sphi 0, %s22
      %p19 = scmp.ge.s32.totalorder %s18, 4
      %s28 = sphi 0, %s30
      %s31 = sphi 0, %s28
      %s32 = sphi 0, %s31
      %s48 = sphi 0, %s32
      %s52 = sphi 0, %s52
      %s54 = sphi 0, %s52
      %s55 = sphi 0, %s54
      %s69 = sphi 0, %s55
      %s73 = sphi 0, %s73
      %s75 = sphi 0, %s73
      %s76 = sphi 0, %s75
      %s90 = sphi 0, %s76
      %s94 = sphi 0, %s94
      %s96 = sphi 0, %s94
      %s97 = sphi 0, %s96
      %s111 = sphi 0, %s97
      %s115 = sphi 0, %s115
      %s117 = sphi 0, %s115
      %s118 = sphi 0, %s117
      %s132 = sphi 0, %s118
      %s138 = sphi 0, %s140
      %s141 = sphi 0, %s138
      %s142 = sphi 0, %s141
      %s158 = sphi 0, %s142
    $region4: #{tpu_custom_call.1} parent=1 // loop_header_branch
      %21 = sbr.rel (%p19) target = $region8
    $region5: #{tpu_custom_call.1} parent=1 // loop_body
      %s23 = ssub.s32 %s18, 1
      %s24 = ssub.s32 %s18, 2
      %s25 = sadd.s32 %s18, 1
      %s26 = ssub.s32 %s18, %s25
      %p27 = scmp.eq.s32.totalorder %s26, 0
      %s29 = sadd.s32 %s28, 1
      %s30 = scalar_select %p27, %s28, %s29
      %p33 = pneg %p27
      %p34 = scmp.eq.s32.totalorder %s18, 1
      %p35 = por %p33, %p34
      %p36 = scmp.ne.s32.totalorder %s28, %s31
      %p37 = scmp.eq.s32.totalorder %s18, 0
      %p38 = por %p36, %p37
      %p39 = scmp.ne.s32.totalorder %s28, %s31
      %p40 = scmp.eq.s32.totalorder %s23, 1
      %p41 = por %p39, %p40
      %p42 = scmp.ne.s32.totalorder %s31, %s32
      %p43 = scmp.eq.s32.totalorder %s23, 0
      %p44 = por %p42, %p43
      %p45 = scmp.ne.s32.totalorder %s31, %s32
      %p46 = scmp.eq.s32.totalorder %s24, 1
      %p47 = por %p45, %p46
      %p49 = scmp.ne.s32.totalorder %s32, %s48
      %p50 = scmp.eq.s32.totalorder %s24, 0
      %p51 = por %p49, %p50
      %s53 = sadd.s32 %s52, 1
      %p56 = scmp.eq.s32.totalorder %s18, 1
      %p57 = scmp.ne.s32.totalorder %s52, %s54
      %p58 = scmp.eq.s32.totalorder %s18, 0
      %p59 = por %p57, %p58
      %p60 = scmp.ne.s32.totalorder %s52, %s54
      %p61 = scmp.eq.s32.totalorder %s23, 1
      %p62 = por %p60, %p61
      %p63 = scmp.ne.s32.totalorder %s54, %s55
      %p64 = scmp.eq.s32.totalorder %s23, 0
      %p65 = por %p63, %p64
      %p66 = scmp.ne.s32.totalorder %s54, %s55
      %p67 = scmp.eq.s32.totalorder %s24, 1
      %p68 = por %p66, %p67
      %p70 = scmp.ne.s32.totalorder %s55, %s69
      %p71 = scmp.eq.s32.totalorder %s24, 0
      %p72 = por %p70, %p71
      %s74 = sadd.s32 %s73, 1
      %p77 = scmp.eq.s32.totalorder %s18, 1
      %p78 = scmp.ne.s32.totalorder %s73, %s75
      %p79 = scmp.eq.s32.totalorder %s18, 0
      %p80 = por %p78, %p79
      %p81 = scmp.ne.s32.totalorder %s73, %s75
      %p82 = scmp.eq.s32.totalorder %s23, 1
      %p83 = por %p81, %p82
      %p84 = scmp.ne.s32.totalorder %s75, %s76
      %p85 = scmp.eq.s32.totalorder %s23, 0
      %p86 = por %p84, %p85
      %p87 = scmp.ne.s32.totalorder %s75, %s76
      %p88 = scmp.eq.s32.totalorder %s24, 1
      %p89 = por %p87, %p88
      %p91 = scmp.ne.s32.totalorder %s76, %s90
      %p92 = scmp.eq.s32.totalorder %s24, 0
      %p93 = por %p91, %p92
      %s95 = sadd.s32 %s94, 1
      %p98 = scmp.eq.s32.totalorder %s18, 1
      %p99 = scmp.ne.s32.totalorder %s94, %s96
      %p100 = scmp.eq.s32.totalorder %s18, 0
      %p101 = por %p99, %p100
      %p102 = scmp.ne.s32.totalorder %s94, %s96
      %p103 = scmp.eq.s32.totalorder %s23, 1
      %p104 = por %p102, %p103
      %p105 = scmp.ne.s32.totalorder %s96, %s97
      %p106 = scmp.eq.s32.totalorder %s23, 0
      %p107 = por %p105, %p106
      %p108 = scmp.ne.s32.totalorder %s96, %s97
      %p109 = scmp.eq.s32.totalorder %s24, 1
      %p110 = por %p108, %p109
      %p112 = scmp.ne.s32.totalorder %s97, %s111
      %p113 = scmp.eq.s32.totalorder %s24, 0
      %p114 = por %p112, %p113
      %s116 = sadd.s32 %s115, 1
      %p119 = scmp.eq.s32.totalorder %s18, 1
      %p120 = scmp.ne.s32.totalorder %s115, %s117
      %p121 = scmp.eq.s32.totalorder %s18, 0
      %p122 = por %p120, %p121
      %p123 = scmp.ne.s32.totalorder %s115, %s117
      %p124 = scmp.eq.s32.totalorder %s23, 1
      %p125 = por %p123, %p124
      %p126 = scmp.ne.s32.totalorder %s117, %s118
      %p127 = scmp.eq.s32.totalorder %s23, 0
      %p128 = por %p126, %p127
      %p129 = scmp.ne.s32.totalorder %s117, %s118
      %p130 = scmp.eq.s32.totalorder %s24, 1
      %p131 = por %p129, %p130
      %p133 = scmp.ne.s32.totalorder %s118, %s132
      %p134 = scmp.eq.s32.totalorder %s24, 0
      %p135 = por %p133, %p134
      %s136 = ssub.s32 %s18, %s25
      %p137 = scmp.eq.s32.totalorder %s136, 0
      %s139 = sadd.s32 %s138, 1
      %s140 = scalar_select %p137, %s138, %s139
      %p143 = pneg %p137
      %p144 = scmp.eq.s32.totalorder %s18, 1
      %p145 = por %p143, %p144
      %p146 = scmp.ne.s32.totalorder %s138, %s141
      %p147 = scmp.eq.s32.totalorder %s18, 0
      %p148 = por %p146, %p147
      %p149 = scmp.ne.s32.totalorder %s138, %s141
      %p150 = scmp.eq.s32.totalorder %s23, 1
      %p151 = por %p149, %p150
      %p152 = scmp.ne.s32.totalorder %s141, %s142
      %p153 = scmp.eq.s32.totalorder %s23, 0
      %p154 = por %p152, %p153
      %p155 = scmp.ne.s32.totalorder %s141, %s142
      %p156 = scmp.eq.s32.totalorder %s24, 1
      %p157 = por %p155, %p156
      %p159 = scmp.ne.s32.totalorder %s142, %s158
      %p160 = scmp.eq.s32.totalorder %s24, 0
      %p161 = por %p159, %p160
      %p162 = scmp.le.s32.totalorder 1, %s18
      %p163 = scmp.lt.s32.totalorder %s18, 3
      %p164 = pnand %p162, %p163
      %p165 = pneg %p164
      // Predicated region
      $region9: #{tpu_custom_call.1} parent=5 // pred_check
        _
      $region10: #{tpu_custom_call.1} parent=5 // pred_check_branch
        %167 = sbr.rel (%p164) target = $region12
      $region11: #{tpu_custom_call.1} parent=5 // pred_region
        %s168 = ssub.s32 %s18, 1
        // Predicated region
        $region13: #{tpu_custom_call.1} parent=11 // pred_check
          %p169 = pneg %p65
        $region14: #{tpu_custom_call.1} parent=11 // pred_check_branch
          %171 = sbr.rel (%p169) target = $region16
        $region15: #{tpu_custom_call.1} parent=11 // pred_region
          %173 = vsyncadd [#allocation6], 0
          %s174 = sshll.u32 %s1, 4
          %s175 = int_to_ptr.hbm [resolvable:$true] %s174
          %s176 = sshll.u32 [#allocation5], 4
          %s177 = int_to_ptr.vmem [resolvable:$true] %s176
          %182 = dma.hbm_to_vmem [thread:$0]  %s175, 2304, %s177, [#allocation6], 64, 64, 4
        $region16: #{tpu_custom_call.1} parent=11 // pred_fallthru
          _
        // Predicated region
        $region17: #{tpu_custom_call.1} parent=11 // pred_check
          %p183 = pneg %p86
        $region18: #{tpu_custom_call.1} parent=11 // pred_check_branch
          %185 = sbr.rel (%p183) target = $region20
        $region19: #{tpu_custom_call.1} parent=11 // pred_region
          _
        $region20: #{tpu_custom_call.1} parent=11 // pred_fallthru
          _
        // Predicated region
        $region21: #{tpu_custom_call.1} parent=11 // pred_check
          %p186 = pneg %p107
        $region22: #{tpu_custom_call.1} parent=11 // pred_check_branch
          %188 = sbr.rel (%p186) target = $region24
        $region23: #{tpu_custom_call.1} parent=11 // pred_region
          %190 = vsyncadd [#allocation6], 0
          %s191 = sshll.u32 %s3, 4
          %s192 = int_to_ptr.hbm [resolvable:$true] %s191
          %s193 = sshll.u32 [#allocation7], 4
          %s194 = int_to_ptr.vmem [resolvable:$true] %s193
          %199 = dma.hbm_to_vmem [thread:$0]  %s192, 2304, %s194, [#allocation6], 64, 64, 4
        $region24: #{tpu_custom_call.1} parent=11 // pred_fallthru
          _
        // Predicated region
        $region25: #{tpu_custom_call.1} parent=11 // pred_check
          %p200 = pneg %p128
        $region26: #{tpu_custom_call.1} parent=11 // pred_check_branch
          %202 = sbr.rel (%p200) target = $region28
        $region27: #{tpu_custom_call.1} parent=11 // pred_region
          _
        $region28: #{tpu_custom_call.1} parent=11 // pred_fallthru
          _
      $region12: #{tpu_custom_call.1} parent=5 // pred_fallthru
        _
      %p203 = scmp.lt.s32.totalorder %s18, 2
      // Predicated region
      $region29: #{tpu_custom_call.1} parent=5 // pred_check
        %p204 = pneg %p203
      $region30: #{tpu_custom_call.1} parent=5 // pred_check_branch
        %206 = sbr.rel (%p204) target = $region32
      $region31: #{tpu_custom_call.1} parent=5 // pred_region
        // Predicated region
        $region33: #{tpu_custom_call.1} parent=31 // pred_check
          %p207 = pneg %p38
        $region34: #{tpu_custom_call.1} parent=31 // pred_check_branch
          %209 = sbr.rel (%p207) target = $region36
        $region35: #{tpu_custom_call.1} parent=31 // pred_region
          %s210 = sand.u32 %s28, 1
          %s211 = scalar_lea.sflag [#allocation3], %s210
          %s212 = sand.u32 %s28, 1
          %s213 = smul.addr %s212, 64
          %s214 = scalar_lea.vmem [#allocation2], %s213
          %216 = vsyncadd %s211, 0
          %s217 = smul.addr %s18, 8
          %s218 = smul.addr %s217, 8
          %s219 = scalar_lea.hbm %s0, %s218
          %s220 = sshll.u32 %s219, 4
          %s221 = int_to_ptr.hbm [resolvable:$true] %s220
          %s222 = sshll.u32 %s214, 4
          %s223 = int_to_ptr.vmem [resolvable:$true] %s222
          %228 = dma.hbm_to_vmem [thread:$0]  %s221, 1024, %s223, %s211, 256, 256, 16
        $region36: #{tpu_custom_call.1} parent=31 // pred_fallthru
          _
      $region32: #{tpu_custom_call.1} parent=5 // pred_fallthru
        _
      %p229 = scmp.le.s32.totalorder 1, %s18
      %p230 = scmp.lt.s32.totalorder %s18, 3
      %p231 = pnand %p229, %p230
      %p232 = pneg %p231
      // Predicated region
      $region37: #{tpu_custom_call.1} parent=5 // pred_check
        _
      $region38: #{tpu_custom_call.1} parent=5 // pred_check_branch
        %234 = sbr.rel (%p231) target = $region40
      $region39: #{tpu_custom_call.1} parent=5 // pred_region
        %s235 = ssub.s32 %s18, 1
        %s236 = sand.u32 %s31, 1
        %s237 = scalar_lea.sflag [#allocation3], %s236
        %s238 = sand.u32 %s31, 1
        %s239 = smul.addr %s238, 64
        %s240 = scalar_lea.vmem [#allocation2], %s239
        // Predicated region
        $region41: #{tpu_custom_call.1} parent=39 // pred_check
          %p241 = pneg %p44
        $region42: #{tpu_custom_call.1} parent=39 // pred_check_branch
          %243 = sbr.rel (%p241) target = $region44
        $region43: #{tpu_custom_call.1} parent=39 // pred_region
          %245 = dma.done %s237, 1024
        $region44: #{tpu_custom_call.1} parent=39 // pred_fallthru
          _
        // Predicated region
        $region45: #{tpu_custom_call.1} parent=39 // pred_check
          %p246 = pneg %p65
        $region46: #{tpu_custom_call.1} parent=39 // pred_check_branch
          %248 = sbr.rel (%p246) target = $region48
        $region47: #{tpu_custom_call.1} parent=39 // pred_region
          %250 = dma.done [#allocation6], 2304
        $region48: #{tpu_custom_call.1} parent=39 // pred_fallthru
          _
        // Predicated region
        $region49: #{tpu_custom_call.1} parent=39 // pred_check
          %p251 = pneg %p107
        $region50: #{tpu_custom_call.1} parent=39 // pred_check_branch
          %253 = sbr.rel (%p251) target = $region52
        $region51: #{tpu_custom_call.1} parent=39 // pred_region
          %255 = dma.done [#allocation6], 2304
        $region52: #{tpu_custom_call.1} parent=39 // pred_fallthru
          _
        %s256 = sand.u32 %s31, 1
        %s257 = scalar_lea.sflag [#allocation3], %s256
        %s258 = sand.u32 %s31, 1
        %s259 = smul.addr %s258, 64
        %s260 = scalar_lea.vmem [#allocation2], %s259
        %p261 = pneg %p44
        %p262 = pneg %p41
        %p263 = pneg %p65
        %p264 = pneg %p62
        %p265 = pneg %p86
        %p266 = pneg %p83
        %p267 = pneg %p107
        %p268 = pneg %p104
        %p269 = pneg %p128
        %p270 = pneg %p125
        %p271 = pneg %p154
        %p272 = pneg %p151
        %s273 = sand.u32 %s141, 1
        %s274 = scalar_lea.sflag [#allocation4], %s273
        %s275 = sand.u32 %s141, 1
        %s276 = smul.addr %s275, 64
        %s277 = scalar_lea.vmem [#allocation8], %s276
        %v281 = vld [vmem:[%s240] sm:$0xff]
        %v282 = vld [vmem:[%s240 + $0x8] sm:$0xff]
        %v283 = vld [vmem:[%s240 + $0x10] sm:$0xff]
        %v284 = vld [vmem:[%s240 + $0x18] sm:$0xff]
        %v285 = vld [vmem:[%s240 + $0x20] sm:$0xff]
        %v286 = vld [vmem:[%s240 + $0x28] sm:$0xff]
        %v287 = vld [vmem:[%s240 + $0x30] sm:$0xff]
        %v288 = vld [vmem:[%s240 + $0x38] sm:$0xff]
        %v289 = vpack.c.bf16 %v282, %v281
        %v290 = vpack.c.bf16 %v284, %v283
        %v291 = vpack.c.bf16 %v286, %v285
        %v292 = vpack.c.bf16 %v288, %v287
        %v293 = vlaneseq
        %v294 = vand.u32 %v293, 127
        %v295 = vadd.s32 %v294, 128
        %vm296 = vcmp.lt.s32.totalorder %v294, 0
        %v297 = vsub.s32 0, %v294
        %v298 = vsel %vm296, %v297, %v294
        %v299 = vshrl.u32 %v298, 4
        %v300 = vand.u32 %v298, 15
        %v301 = vsub.s32 0, %v300
        %v302 = vsel %vm296, %v301, %v300
        %vm303 = vcmp.lt.s32.totalorder %v295, 0
        %v304 = vsub.s32 0, %v295
        %v305 = vsel %vm303, %v304, %v295
        %v306 = vshrl.u32 %v305, 4
        %v307 = vand.u32 %v305, 15
        %v308 = vsub.s32 0, %v307
        %v309 = vsel %vm303, %v308, %v307
        %vm310 = vcmp.ne.s32.totalorder %v302, 0
        %vm311 = vcmp.ne.s32.totalorder %v309, 0
        %vm312 = vcmp.lt.s32.totalorder %v302, 0
        %vm313 = vcmp.lt.s32.totalorder %v309, 0
        %vm314 = vmand %vm312, %vm310
        %vm315 = vmand %vm313, %vm311
        %v316 = vadd.s32 %v302, 16
        %v317 = vadd.s32 %v309, 16
        %v318 = vsel %vm314, %v316, %v302
        %v319 = vsel %vm315, %v317, %v309
        %vm320 = vcmp.ge.s32.totalorder %v318, 1
        %vm321 = vcmp.ge.s32.totalorder %v319, 1
        %vm322 = vcmp.le.s32.totalorder %v318, 14
        %vm323 = vcmp.le.s32.totalorder %v319, 14
        %v328 = vunpack.c.l.b16 %v289
        %v329 = vunpack.c.h.b16 %v289
        %v330 = vunpack.c.l.b16 %v290
        %v331 = vunpack.c.h.b16 %v290
        %v332 = vunpack.c.l.b16 %v291
        %v333 = vunpack.c.h.b16 %v291
        %v334 = vunpack.c.l.b16 %v292
        %v335 = vunpack.c.h.b16 %v292
        %v336 = vpack.c.b16 %v330, %v328
        %v337 = vpack.c.b16 %v331, %v329
        %v338 = vpack.c.b16 %v334, %v332
        %v339 = vpack.c.b16 %v335, %v333
        %340 = vrot.lane.b32.xlu0 %v336, 17
        %v341 = vpop.permute.xlu0 %340
        %342 = vrot.lane.b32.xlu0 %v337, 17
        %v343 = vpop.permute.xlu0 %342
        %344 = vrot.lane.b32.xlu0 %v338, 17
        %v345 = vpop.permute.xlu0 %344
        %346 = vrot.lane.b32.xlu0 %v339, 17
        %v347 = vpop.permute.xlu0 %346
        %vm348 = vcmask 138240
        %v349 = vsel %vm348, %v341, %v343
        %v350 = vsel %vm348, %v345, %v347
        %vm353 = vcmask 138240
        %v356 = vsel %vm353, 0, %v341
        %v359 = vsel %vm353, 0, %v345
        %vm361 = vmpackc.low %vm321, %vm320
        %v362 = vsel %vm361, 65537, 0
        %v363 = vperm.slane %v362, 0
        %v364 = vperm.slane %v362, 4
        %v365 = vunpack.c.l.b16 %v363
        %v366 = vunpack.c.h.b16 %v363
        %v367 = vunpack.c.l.b16 0
        %v368 = vunpack.c.h.b16 0
        %vm369 = vcmp.ne.s32.totalorder %v365, %v367
        %vm370 = vcmp.ne.s32.totalorder %v366, %v368
        %vm371 = vmpackc.low %vm370, %vm369
        %v372 = vunpack.c.l.b16 %v364
        %v373 = vunpack.c.h.b16 %v364
        %v374 = vunpack.c.l.b16 0
        %v375 = vunpack.c.h.b16 0
        %vm376 = vcmp.ne.s32.totalorder %v372, %v374
        %vm377 = vcmp.ne.s32.totalorder %v373, %v375
        %vm378 = vmpackc.low %vm377, %vm376
        %v379 = vsel %vm371, %v356, 0
        %v380 = vsel %vm378, %v349, 0
        %v381 = vsel %vm371, %v359, 0
        %v382 = vsel %vm378, %v350, 0
        %v383 = vld [vmem:[#allocation5] sm:$0xf]
        %v384 = vld [vmem:[#allocation5 + $0x4] sm:$0xf]
        %v385 = vld [vmem:[#allocation5 + $0x8] sm:$0xf]
        %v386 = vld [vmem:[#allocation5 + $0xc] sm:$0xf]
        %387 = vrot.lane.b32.xlu0 %v336, 16
        %v388 = vpop.permute.xlu0 %387
        %389 = vrot.lane.b32.xlu0 %v337, 16
        %v390 = vpop.permute.xlu0 %389
        %391 = vrot.lane.b32.xlu0 %v338, 16
        %v392 = vpop.permute.xlu0 %391
        %393 = vrot.lane.b32.xlu0 %v339, 16
        %v394 = vpop.permute.xlu0 %393
        %vm395 = vcmask 130048
        %v396 = vsel %vm395, %v388, %v390
        %v397 = vsel %vm395, %v392, %v394
        %vm400 = vcmask 130048
        %v402 = vsel %vm400, 0, %v388
        %v405 = vsel %vm400, 0, %v392
        %s407 = scalar_lea.vmem [#allocation5], 16
        %v408 = vld [vmem:[%s407] sm:$0xf]
        %v409 = vld [vmem:[%s407 + $0x4] sm:$0xf]
        %v410 = vld [vmem:[%s407 + $0x8] sm:$0xf]
        %v411 = vld [vmem:[%s407 + $0xc] sm:$0xf]
        %v416 = vunpack.c.l.b16 %v408
        %v417 = vunpack.c.l.b16 %v409
        %v418 = vunpack.c.l.b16 %v410
        %v419 = vunpack.c.l.b16 %v411
        %v420 = vpack.c.b16 %v417, %v416
        %v421 = vpack.c.b16 %v419, %v418
        %vm422 = vcmask 261120
        %v424 = vsel %vm422, %v420, 0
        %v427 = vsel %vm422, %v421, 0
        %429 = vmatpush.bf16.msra.mxu0 0
        %430 = vmatpush.bf16.msra.mxu0 0
        %431 = vmatpush.bf16.msra.mxu0 0
        %432 = vmatpush.bf16.msra.mxu0 0
        %433 = vmatpush.bf16.msra.mxu0 0
        %434 = vmatpush.bf16.msra.mxu0 0
        %435 = vmatpush.bf16.msra.mxu0 %v405
        %436 = vmatpush.bf16.msra.mxu0 %v402
        %437 = vmatmul.bf16.gmra.mxu0 %v424
        %v438 = vpop.f32.mrf.mxu0
        %v439 = vadd.f32 0.0, %v438
        %v440 = vpop.f32.mrf.mxu0
        %v441 = vadd.f32 0.0, %v440
        %442 = vmatmul.bf16.gmra.mxu0 %v427
        %v443 = vpop.f32.mrf.mxu0
        %v444 = vadd.f32 0.0, %v443
        %v445 = vpop.f32.mrf.mxu0
        %v446 = vadd.f32 0.0, %v445
        %447 = vdwg.mxu0
        %448 = vmatpush.bf16.msra.mxu0 0
        %449 = vmatpush.bf16.msra.mxu0 0
        %450 = vmatpush.bf16.msra.mxu0 0
        %451 = vmatpush.bf16.msra.mxu0 0
        %452 = vmatpush.bf16.msra.mxu0 0
        %453 = vmatpush.bf16.msra.mxu0 0
        %454 = vmatpush.bf16.msra.mxu0 %v397
        %455 = vmatpush.bf16.msra.mxu0 %v396
        %456 = vmatmul.bf16.gmra.mxu0 %v424
        %v457 = vpop.f32.mrf.mxu0
        %v458 = vadd.f32 0.0, %v457
        %v459 = vpop.f32.mrf.mxu0
        %v460 = vadd.f32 0.0, %v459
        %461 = vmatmul.bf16.gmra.mxu0 %v427
        %v462 = vpop.f32.mrf.mxu0
        %v463 = vadd.f32 0.0, %v462
        %v464 = vpop.f32.mrf.mxu0
        %v465 = vadd.f32 0.0, %v464
        %466 = vdwg.mxu0
        %v471 = vunpack.c.l.b16 %v383
        %v472 = vunpack.c.l.b16 %v384
        %v473 = vunpack.c.l.b16 %v385
        %v474 = vunpack.c.l.b16 %v386
        %v475 = vpack.c.b16 %v472, %v471
        %v476 = vpack.c.b16 %v474, %v473
        %v478 = vsel %vm422, %v475, 0
        %v481 = vsel %vm422, %v476, 0
        %483 = vmatpush.bf16.msra.mxu0 0
        %484 = vmatpush.bf16.msra.mxu0 0
        %485 = vmatpush.bf16.msra.mxu0 0
        %486 = vmatpush.bf16.msra.mxu0 0
        %487 = vmatpush.bf16.msra.mxu0 0
        %488 = vmatpush.bf16.msra.mxu0 0
        %489 = vmatpush.bf16.msra.mxu0 %v381
        %490 = vmatpush.bf16.msra.mxu0 %v379
        %491 = vmatmul.bf16.gmra.mxu0 %v478
        %v492 = vpop.f32.mrf.mxu0
        %v493 = vadd.f32 %v439, %v492
        %v494 = vpop.f32.mrf.mxu0
        %v495 = vadd.f32 %v441, %v494
        %496 = vmatmul.bf16.gmra.mxu0 %v481
        %v497 = vpop.f32.mrf.mxu0
        %v498 = vadd.f32 %v444, %v497
        %v499 = vpop.f32.mrf.mxu0
        %v500 = vadd.f32 %v446, %v499
        %501 = vdwg.mxu0
        %502 = vmatpush.bf16.msra.mxu0 0
        %503 = vmatpush.bf16.msra.mxu0 0
        %504 = vmatpush.bf16.msra.mxu0 0
        %505 = vmatpush.bf16.msra.mxu0 0
        %506 = vmatpush.bf16.msra.mxu0 0
        %507 = vmatpush.bf16.msra.mxu0 0
        %508 = vmatpush.bf16.msra.mxu0 %v382
        %509 = vmatpush.bf16.msra.mxu0 %v380
        %510 = vmatmul.bf16.gmra.mxu0 %v478
        %v511 = vpop.f32.mrf.mxu0
        %v512 = vadd.f32 %v458, %v511
        %v513 = vpop.f32.mrf.mxu0
        %v514 = vadd.f32 %v460, %v513
        %515 = vmatmul.bf16.gmra.mxu0 %v481
        %v516 = vpop.f32.mrf.mxu0
        %v517 = vadd.f32 %v463, %v516
        %v518 = vpop.f32.mrf.mxu0
        %v519 = vadd.f32 %v465, %v518
        %520 = vdwg.mxu0
        %521 = vrot.lane.b32.xlu0 %v336, 15
        %v522 = vpop.permute.xlu0 %521
        %523 = vrot.lane.b32.xlu0 %v337, 15
        %v524 = vpop.permute.xlu0 %523
        %525 = vrot.lane.b32.xlu0 %v338, 15
        %v526 = vpop.permute.xlu0 %525
        %527 = vrot.lane.b32.xlu0 %v339, 15
        %v528 = vpop.permute.xlu0 %527
        %vm529 = vcmask 121856
        %v530 = vsel %vm529, %v522, %v524
        %v531 = vsel %vm529, %v526, %v528
        %vm534 = vcmask 121856
        %v536 = vsel %vm534, 0, %v522
        %v539 = vsel %vm534, 0, %v526
        %vm541 = vmpackc.low %vm323, %vm322
        %v542 = vsel %vm541, 65537, 0
        %v543 = vperm.slane %v542, 0
        %v544 = vperm.slane %v542, 4
        %v545 = vunpack.c.l.b16 %v543
        %v546 = vunpack.c.h.b16 %v543
        %v547 = vunpack.c.l.b16 0
        %v548 = vunpack.c.h.b16 0
        %vm549 = vcmp.ne.s32.totalorder %v545, %v547
        %vm550 = vcmp.ne.s32.totalorder %v546, %v548
        %vm551 = vmpackc.low %vm550, %vm549
        %v552 = vunpack.c.l.b16 %v544
        %v553 = vunpack.c.h.b16 %v544
        %v554 = vunpack.c.l.b16 0
        %v555 = vunpack.c.h.b16 0
        %vm556 = vcmp.ne.s32.totalorder %v552, %v554
        %vm557 = vcmp.ne.s32.totalorder %v553, %v555
        %vm558 = vmpackc.low %vm557, %vm556
        %v559 = vsel %vm551, %v536, 0
        %v560 = vsel %vm558, %v530, 0
        %v561 = vsel %vm551, %v539, 0
        %v562 = vsel %vm558, %v531, 0
        %s563 = scalar_lea.vmem [#allocation5], 32
        %v564 = vld [vmem:[%s563] sm:$0xf]
        %v565 = vld [vmem:[%s563 + $0x4] sm:$0xf]
        %v566 = vld [vmem:[%s563 + $0x8] sm:$0xf]
        %v567 = vld [vmem:[%s563 + $0xc] sm:$0xf]
        %v572 = vunpack.c.l.b16 %v564
        %v573 = vunpack.c.l.b16 %v565
        %v574 = vunpack.c.l.b16 %v566
        %v575 = vunpack.c.l.b16 %v567
        %v576 = vpack.c.b16 %v573, %v572
        %v577 = vpack.c.b16 %v575, %v574
        %v579 = vsel %vm422, %v576, 0
        %v582 = vsel %vm422, %v577, 0
        %584 = vmatpush.bf16.msra.mxu0 0
        %585 = vmatpush.bf16.msra.mxu0 0
        %586 = vmatpush.bf16.msra.mxu0 0
        %587 = vmatpush.bf16.msra.mxu0 0
        %588 = vmatpush.bf16.msra.mxu0 0
        %589 = vmatpush.bf16.msra.mxu0 0
        %590 = vmatpush.bf16.msra.mxu0 %v561
        %591 = vmatpush.bf16.msra.mxu0 %v559
        %592 = vmatmul.bf16.gmra.mxu0 %v579
        %v593 = vpop.f32.mrf.mxu0
        %v594 = vadd.f32 0.0, %v593
        %v595 = vpop.f32.mrf.mxu0
        %v596 = vadd.f32 0.0, %v595
        %597 = vmatmul.bf16.gmra.mxu0 %v582
        %v598 = vpop.f32.mrf.mxu0
        %v599 = vadd.f32 0.0, %v598
        %v600 = vpop.f32.mrf.mxu0
        %v601 = vadd.f32 0.0, %v600
        %602 = vdwg.mxu0
        %603 = vmatpush.bf16.msra.mxu0 0
        %604 = vmatpush.bf16.msra.mxu0 0
        %605 = vmatpush.bf16.msra.mxu0 0
        %606 = vmatpush.bf16.msra.mxu0 0
        %607 = vmatpush.bf16.msra.mxu0 0
        %608 = vmatpush.bf16.msra.mxu0 0
        %609 = vmatpush.bf16.msra.mxu0 %v562
        %610 = vmatpush.bf16.msra.mxu0 %v560
        %611 = vmatmul.bf16.gmra.mxu0 %v579
        %v612 = vpop.f32.mrf.mxu0
        %v613 = vadd.f32 0.0, %v612
        %v614 = vpop.f32.mrf.mxu0
        %v615 = vadd.f32 0.0, %v614
        %616 = vmatmul.bf16.gmra.mxu0 %v582
        %v617 = vpop.f32.mrf.mxu0
        %v618 = vadd.f32 0.0, %v617
        %v619 = vpop.f32.mrf.mxu0
        %v620 = vadd.f32 0.0, %v619
        %621 = vdwg.mxu0
        %v622 = vadd.f32 %v493, %v594
        %v623 = vadd.f32 %v512, %v613
        %v624 = vadd.f32 %v495, %v596
        %v625 = vadd.f32 %v514, %v615
        %v626 = vadd.f32 %v498, %v599
        %v627 = vadd.f32 %v517, %v618
        %v628 = vadd.f32 %v500, %v601
        %v629 = vadd.f32 %v519, %v620
        %630 = vrot.lane.b32.xlu0 %v336, 1
        %v631 = vpop.permute.xlu0 %630
        %632 = vrot.lane.b32.xlu0 %v337, 1
        %v633 = vpop.permute.xlu0 %632
        %634 = vrot.lane.b32.xlu0 %v338, 1
        %v635 = vpop.permute.xlu0 %634
        %636 = vrot.lane.b32.xlu0 %v339, 1
        %v637 = vpop.permute.xlu0 %636
        %vm638 = vcmask 7168
        %v639 = vsel %vm638, %v631, %v633
        %v640 = vsel %vm638, %v635, %v637
        %vm643 = vcmask 7168
        %v645 = vsel %vm643, 0, %v631
        %v648 = vsel %vm643, 0, %v635
        %v650 = vsel %vm371, %v645, 0
        %v651 = vsel %vm378, %v639, 0
        %v652 = vsel %vm371, %v648, 0
        %v653 = vsel %vm378, %v640, 0
        %s654 = scalar_lea.vmem [#allocation5], 48
        %v655 = vld [vmem:[%s654] sm:$0xf]
        %v656 = vld [vmem:[%s654 + $0x4] sm:$0xf]
        %v657 = vld [vmem:[%s654 + $0x8] sm:$0xf]
        %v658 = vld [vmem:[%s654 + $0xc] sm:$0xf]
        %v663 = vunpack.c.l.b16 %v655
        %v664 = vunpack.c.l.b16 %v656
        %v665 = vunpack.c.l.b16 %v657
        %v666 = vunpack.c.l.b16 %v658
        %v667 = vpack.c.b16 %v664, %v663
        %v668 = vpack.c.b16 %v666, %v665
        %v670 = vsel %vm422, %v667, 0
        %v673 = vsel %vm422, %v668, 0
        %675 = vmatpush.bf16.msra.mxu0 0
        %676 = vmatpush.bf16.msra.mxu0 0
        %677 = vmatpush.bf16.msra.mxu0 0
        %678 = vmatpush.bf16.msra.mxu0 0
        %679 = vmatpush.bf16.msra.mxu0 0
        %680 = vmatpush.bf16.msra.mxu0 0
        %681 = vmatpush.bf16.msra.mxu0 %v652
        %682 = vmatpush.bf16.msra.mxu0 %v650
        %683 = vmatmul.bf16.gmra.mxu0 %v670
        %v684 = vpop.f32.mrf.mxu0
        %v685 = vadd.f32 0.0, %v684
        %v686 = vpop.f32.mrf.mxu0
        %v687 = vadd.f32 0.0, %v686
        %688 = vmatmul.bf16.gmra.mxu0 %v673
        %v689 = vpop.f32.mrf.mxu0
        %v690 = vadd.f32 0.0, %v689
        %v691 = vpop.f32.mrf.mxu0
        %v692 = vadd.f32 0.0, %v691
        %693 = vdwg.mxu0
        %694 = vmatpush.bf16.msra.mxu0 0
        %695 = vmatpush.bf16.msra.mxu0 0
        %696 = vmatpush.bf16.msra.mxu0 0
        %697 = vmatpush.bf16.msra.mxu0 0
        %698 = vmatpush.bf16.msra.mxu0 0
        %699 = vmatpush.bf16.msra.mxu0 0
        %700 = vmatpush.bf16.msra.mxu0 %v653
        %701 = vmatpush.bf16.msra.mxu0 %v651
        %702 = vmatmul.bf16.gmra.mxu0 %v670
        %v703 = vpop.f32.mrf.mxu0
        %v704 = vadd.f32 0.0, %v703
        %v705 = vpop.f32.mrf.mxu0
        %v706 = vadd.f32 0.0, %v705
        %707 = vmatmul.bf16.gmra.mxu0 %v673
        %v708 = vpop.f32.mrf.mxu0
        %v709 = vadd.f32 0.0, %v708
        %v710 = vpop.f32.mrf.mxu0
        %v711 = vadd.f32 0.0, %v710
        %712 = vdwg.mxu0
        %v713 = vadd.f32 %v622, %v685
        %v714 = vadd.f32 %v623, %v704
        %v715 = vadd.f32 %v624, %v687
        %v716 = vadd.f32 %v625, %v706
        %v717 = vadd.f32 %v626, %v690
        %v718 = vadd.f32 %v627, %v709
        %v719 = vadd.f32 %v628, %v692
        %v720 = vadd.f32 %v629, %v711
        %s721 = scalar_lea.vmem [#allocation5], 64
        %v722 = vld [vmem:[%s721] sm:$0xf]
        %v723 = vld [vmem:[%s721 + $0x4] sm:$0xf]
        %v724 = vld [vmem:[%s721 + $0x8] sm:$0xf]
        %v725 = vld [vmem:[%s721 + $0xc] sm:$0xf]
        %v730 = vunpack.c.l.b16 %v722
        %v731 = vunpack.c.l.b16 %v723
        %v732 = vunpack.c.l.b16 %v724
        %v733 = vunpack.c.l.b16 %v725
        %v734 = vpack.c.b16 %v731, %v730
        %v735 = vpack.c.b16 %v733, %v732
        %v741 = vsel %vm422, %v734, 0
        %v744 = vsel %vm422, %v735, 0
        %746 = vmatpush.bf16.msra.mxu0 0
        %747 = vmatpush.bf16.msra.mxu0 0
        %748 = vmatpush.bf16.msra.mxu0 0
        %749 = vmatpush.bf16.msra.mxu0 0
        %750 = vmatpush.bf16.msra.mxu0 0
        %751 = vmatpush.bf16.msra.mxu0 0
        %752 = vmatpush.bf16.msra.mxu0 %v338
        %753 = vmatpush.bf16.msra.mxu0 %v336
        %754 = vmatmul.bf16.gmra.mxu0 %v741
        %v755 = vpop.f32.mrf.mxu0
        %v756 = vadd.f32 0.0, %v755
        %v757 = vpop.f32.mrf.mxu0
        %v758 = vadd.f32 0.0, %v757
        %759 = vmatmul.bf16.gmra.mxu0 %v744
        %v760 = vpop.f32.mrf.mxu0
        %v761 = vadd.f32 0.0, %v760
        %v762 = vpop.f32.mrf.mxu0
        %v763 = vadd.f32 0.0, %v762
        %764 = vdwg.mxu0
        %765 = vmatpush.bf16.msra.mxu0 0
        %766 = vmatpush.bf16.msra.mxu0 0
        %767 = vmatpush.bf16.msra.mxu0 0
        %768 = vmatpush.bf16.msra.mxu0 0
        %769 = vmatpush.bf16.msra.mxu0 0
        %770 = vmatpush.bf16.msra.mxu0 0
        %771 = vmatpush.bf16.msra.mxu0 %v339
        %772 = vmatpush.bf16.msra.mxu0 %v337
        %773 = vmatmul.bf16.gmra.mxu0 %v741
        %v774 = vpop.f32.mrf.mxu0
        %v775 = vadd.f32 0.0, %v774
        %v776 = vpop.f32.mrf.mxu0
        %v777 = vadd.f32 0.0, %v776
        %778 = vmatmul.bf16.gmra.mxu0 %v744
        %v779 = vpop.f32.mrf.mxu0
        %v780 = vadd.f32 0.0, %v779
        %v781 = vpop.f32.mrf.mxu0
        %v782 = vadd.f32 0.0, %v781
        %783 = vdwg.mxu0
        %v784 = vadd.f32 %v713, %v756
        %v785 = vadd.f32 %v714, %v775
        %v786 = vadd.f32 %v715, %v758
        %v787 = vadd.f32 %v716, %v777
        %v788 = vadd.f32 %v717, %v761
        %v789 = vadd.f32 %v718, %v780
        %v790 = vadd.f32 %v719, %v763
        %v791 = vadd.f32 %v720, %v782
        %792 = vrot.lane.b32.xlu0 %v336, 127
        %v793 = vpop.permute.xlu0 %792
        %794 = vrot.lane.b32.xlu0 %v337, 127
        %v795 = vpop.permute.xlu0 %794
        %796 = vrot.lane.b32.xlu0 %v338, 127
        %v797 = vpop.permute.xlu0 %796
        %798 = vrot.lane.b32.xlu0 %v339, 127
        %v799 = vpop.permute.xlu0 %798
        %vm800 = vcmask 1039360
        %v801 = vsel %vm800, %v793, %v795
        %v802 = vsel %vm800, %v797, %v799
        %vm805 = vcmask 1039360
        %v807 = vsel %vm805, %v795, 0
        %v810 = vsel %vm805, %v799, 0
        %v812 = vsel %vm551, %v801, 0
        %v813 = vsel %vm558, %v807, 0
        %v814 = vsel %vm551, %v802, 0
        %v815 = vsel %vm558, %v810, 0
        %s816 = scalar_lea.vmem [#allocation5], 80
        %v817 = vld [vmem:[%s816] sm:$0xf]
        %v818 = vld [vmem:[%s816 + $0x4] sm:$0xf]
        %v819 = vld [vmem:[%s816 + $0x8] sm:$0xf]
        %v820 = vld [vmem:[%s816 + $0xc] sm:$0xf]
        %v825 = vunpack.c.l.b16 %v817
        %v826 = vunpack.c.l.b16 %v818
        %v827 = vunpack.c.l.b16 %v819
        %v828 = vunpack.c.l.b16 %v820
        %v829 = vpack.c.b16 %v826, %v825
        %v830 = vpack.c.b16 %v828, %v827
        %v832 = vsel %vm422, %v829, 0
        %v835 = vsel %vm422, %v830, 0
        %837 = vmatpush.bf16.msra.mxu0 0
        %838 = vmatpush.bf16.msra.mxu0 0
        %839 = vmatpush.bf16.msra.mxu0 0
        %840 = vmatpush.bf16.msra.mxu0 0
        %841 = vmatpush.bf16.msra.mxu0 0
        %842 = vmatpush.bf16.msra.mxu0 0
        %843 = vmatpush.bf16.msra.mxu0 %v814
        %844 = vmatpush.bf16.msra.mxu0 %v812
        %845 = vmatmul.bf16.gmra.mxu0 %v832
        %v846 = vpop.f32.mrf.mxu0
        %v847 = vadd.f32 0.0, %v846
        %v848 = vpop.f32.mrf.mxu0
        %v849 = vadd.f32 0.0, %v848
        %850 = vmatmul.bf16.gmra.mxu0 %v835
        %v851 = vpop.f32.mrf.mxu0
        %v852 = vadd.f32 0.0, %v851
        %v853 = vpop.f32.mrf.mxu0
        %v854 = vadd.f32 0.0, %v853
        %855 = vdwg.mxu0
        %856 = vmatpush.bf16.msra.mxu0 0
        %857 = vmatpush.bf16.msra.mxu0 0
        %858 = vmatpush.bf16.msra.mxu0 0
        %859 = vmatpush.bf16.msra.mxu0 0
        %860 = vmatpush.bf16.msra.mxu0 0
        %861 = vmatpush.bf16.msra.mxu0 0
        %862 = vmatpush.bf16.msra.mxu0 %v815
        %863 = vmatpush.bf16.msra.mxu0 %v813
        %864 = vmatmul.bf16.gmra.mxu0 %v832
        %v865 = vpop.f32.mrf.mxu0
        %v866 = vadd.f32 0.0, %v865
        %v867 = vpop.f32.mrf.mxu0
        %v868 = vadd.f32 0.0, %v867
        %869 = vmatmul.bf16.gmra.mxu0 %v835
        %v870 = vpop.f32.mrf.mxu0
        %v871 = vadd.f32 0.0, %v870
        %v872 = vpop.f32.mrf.mxu0
        %v873 = vadd.f32 0.0, %v872
        %874 = vdwg.mxu0
        %v875 = vadd.f32 %v784, %v847
        %v876 = vadd.f32 %v785, %v866
        %v877 = vadd.f32 %v786, %v849
        %v878 = vadd.f32 %v787, %v868
        %v879 = vadd.f32 %v788, %v852
        %v880 = vadd.f32 %v789, %v871
        %v881 = vadd.f32 %v790, %v854
        %v882 = vadd.f32 %v791, %v873
        %883 = vrot.lane.b32.xlu0 %v336, 113
        %v884 = vpop.permute.xlu0 %883
        %885 = vrot.lane.b32.xlu0 %v337, 113
        %v886 = vpop.permute.xlu0 %885
        %887 = vrot.lane.b32.xlu0 %v338, 113
        %v888 = vpop.permute.xlu0 %887
        %889 = vrot.lane.b32.xlu0 %v339, 113
        %v890 = vpop.permute.xlu0 %889
        %vm891 = vcmask 924672
        %v892 = vsel %vm891, %v884, %v886
        %v893 = vsel %vm891, %v888, %v890
        %vm896 = vcmask 924672
        %v898 = vsel %vm896, %v886, 0
        %v901 = vsel %vm896, %v890, 0
        %v903 = vsel %vm371, %v892, 0
        %v904 = vsel %vm378, %v898, 0
        %v905 = vsel %vm371, %v893, 0
        %v906 = vsel %vm378, %v901, 0
        %s907 = scalar_lea.vmem [#allocation5], 96
        %v908 = vld [vmem:[%s907] sm:$0xf]
        %v909 = vld [vmem:[%s907 + $0x4] sm:$0xf]
        %v910 = vld [vmem:[%s907 + $0x8] sm:$0xf]
        %v911 = vld [vmem:[%s907 + $0xc] sm:$0xf]
        %v916 = vunpack.c.l.b16 %v908
        %v917 = vunpack.c.l.b16 %v909
        %v918 = vunpack.c.l.b16 %v910
        %v919 = vunpack.c.l.b16 %v911
        %v920 = vpack.c.b16 %v917, %v916
        %v921 = vpack.c.b16 %v919, %v918
        %v923 = vsel %vm422, %v920, 0
        %v926 = vsel %vm422, %v921, 0
        %928 = vmatpush.bf16.msra.mxu0 0
        %929 = vmatpush.bf16.msra.mxu0 0
        %930 = vmatpush.bf16.msra.mxu0 0
        %931 = vmatpush.bf16.msra.mxu0 0
        %932 = vmatpush.bf16.msra.mxu0 0
        %933 = vmatpush.bf16.msra.mxu0 0
        %934 = vmatpush.bf16.msra.mxu0 %v905
        %935 = vmatpush.bf16.msra.mxu0 %v903
        %936 = vmatmul.bf16.gmra.mxu0 %v923
        %v937 = vpop.f32.mrf.mxu0
        %v938 = vadd.f32 0.0, %v937
        %v939 = vpop.f32.mrf.mxu0
        %v940 = vadd.f32 0.0, %v939
        %941 = vmatmul.bf16.gmra.mxu0 %v926
        %v942 = vpop.f32.mrf.mxu0
        %v943 = vadd.f32 0.0, %v942
        %v944 = vpop.f32.mrf.mxu0
        %v945 = vadd.f32 0.0, %v944
        %946 = vdwg.mxu0
        %947 = vmatpush.bf16.msra.mxu0 0
        %948 = vmatpush.bf16.msra.mxu0 0
        %949 = vmatpush.bf16.msra.mxu0 0
        %950 = vmatpush.bf16.msra.mxu0 0
        %951 = vmatpush.bf16.msra.mxu0 0
        %952 = vmatpush.bf16.msra.mxu0 0
        %953 = vmatpush.bf16.msra.mxu0 %v906
        %954 = vmatpush.bf16.msra.mxu0 %v904
        %955 = vmatmul.bf16.gmra.mxu0 %v923
        %v956 = vpop.f32.mrf.mxu0
        %v957 = vadd.f32 0.0, %v956
        %v958 = vpop.f32.mrf.mxu0
        %v959 = vadd.f32 0.0, %v958
        %960 = vmatmul.bf16.gmra.mxu0 %v926
        %v961 = vpop.f32.mrf.mxu0
        %v962 = vadd.f32 0.0, %v961
        %v963 = vpop.f32.mrf.mxu0
        %v964 = vadd.f32 0.0, %v963
        %965 = vdwg.mxu0
        %v966 = vadd.f32 %v875, %v938
        %v967 = vadd.f32 %v876, %v957
        %v968 = vadd.f32 %v877, %v940
        %v969 = vadd.f32 %v878, %v959
        %v970 = vadd.f32 %v879, %v943
        %v971 = vadd.f32 %v880, %v962
        %v972 = vadd.f32 %v881, %v945
        %v973 = vadd.f32 %v882, %v964
        %974 = vrot.lane.b32.xlu0 %v336, 112
        %v975 = vpop.permute.xlu0 %974
        %976 = vrot.lane.b32.xlu0 %v337, 112
        %v977 = vpop.permute.xlu0 %976
        %978 = vrot.lane.b32.xlu0 %v338, 112
        %v979 = vpop.permute.xlu0 %978
        %980 = vrot.lane.b32.xlu0 %v339, 112
        %v981 = vpop.permute.xlu0 %980
        %vm982 = vcmask 916480
        %v983 = vsel %vm982, %v975, %v977
        %v984 = vsel %vm982, %v979, %v981
        %vm987 = vcmask 916480
        %v989 = vsel %vm987, %v977, 0
        %v992 = vsel %vm987, %v981, 0
        %s994 = scalar_lea.vmem [#allocation5], 112
        %v995 = vld [vmem:[%s994] sm:$0xf]
        %v996 = vld [vmem:[%s994 + $0x4] sm:$0xf]
        %v997 = vld [vmem:[%s994 + $0x8] sm:$0xf]
        %v998 = vld [vmem:[%s994 + $0xc] sm:$0xf]
        %v1003 = vunpack.c.l.b16 %v995
        %v1004 = vunpack.c.l.b16 %v996
        %v1005 = vunpack.c.l.b16 %v997
        %v1006 = vunpack.c.l.b16 %v998
        %v1007 = vpack.c.b16 %v1004, %v1003
        %v1008 = vpack.c.b16 %v1006, %v1005
        %v1010 = vsel %vm422, %v1007, 0
        %v1013 = vsel %vm422, %v1008, 0
        %1015 = vmatpush.bf16.msra.mxu0 0
        %1016 = vmatpush.bf16.msra.mxu0 0
        %1017 = vmatpush.bf16.msra.mxu0 0
        %1018 = vmatpush.bf16.msra.mxu0 0
        %1019 = vmatpush.bf16.msra.mxu0 0
        %1020 = vmatpush.bf16.msra.mxu0 0
        %1021 = vmatpush.bf16.msra.mxu0 %v984
        %1022 = vmatpush.bf16.msra.mxu0 %v983
        %1023 = vmatmul.bf16.gmra.mxu0 %v1010
        %v1024 = vpop.f32.mrf.mxu0
        %v1025 = vadd.f32 0.0, %v1024
        %v1026 = vpop.f32.mrf.mxu0
        %v1027 = vadd.f32 0.0, %v1026
        %1028 = vmatmul.bf16.gmra.mxu0 %v1013
        %v1029 = vpop.f32.mrf.mxu0
        %v1030 = vadd.f32 0.0, %v1029
        %v1031 = vpop.f32.mrf.mxu0
        %v1032 = vadd.f32 0.0, %v1031
        %1033 = vdwg.mxu0
        %1034 = vmatpush.bf16.msra.mxu0 0
        %1035 = vmatpush.bf16.msra.mxu0 0
        %1036 = vmatpush.bf16.msra.mxu0 0
        %1037 = vmatpush.bf16.msra.mxu0 0
        %1038 = vmatpush.bf16.msra.mxu0 0
        %1039 = vmatpush.bf16.msra.mxu0 0
        %1040 = vmatpush.bf16.msra.mxu0 %v992
        %1041 = vmatpush.bf16.msra.mxu0 %v989
        %1042 = vmatmul.bf16.gmra.mxu0 %v1010
        %v1043 = vpop.f32.mrf.mxu0
        %v1044 = vadd.f32 0.0, %v1043
        %v1045 = vpop.f32.mrf.mxu0
        %v1046 = vadd.f32 0.0, %v1045
        %1047 = vmatmul.bf16.gmra.mxu0 %v1013
        %v1048 = vpop.f32.mrf.mxu0
        %v1049 = vadd.f32 0.0, %v1048
        %v1050 = vpop.f32.mrf.mxu0
        %v1051 = vadd.f32 0.0, %v1050
        %1052 = vdwg.mxu0
        %v1053 = vadd.f32 %v966, %v1025
        %v1054 = vadd.f32 %v967, %v1044
        %v1055 = vadd.f32 %v968, %v1027
        %v1056 = vadd.f32 %v969, %v1046
        %v1057 = vadd.f32 %v970, %v1030
        %v1058 = vadd.f32 %v971, %v1049
        %v1059 = vadd.f32 %v972, %v1032
        %v1060 = vadd.f32 %v973, %v1051
        %1061 = vrot.lane.b32.xlu0 %v336, 111
        %v1062 = vpop.permute.xlu0 %1061
        %1063 = vrot.lane.b32.xlu0 %v337, 111
        %v1064 = vpop.permute.xlu0 %1063
        %1065 = vrot.lane.b32.xlu0 %v338, 111
        %v1066 = vpop.permute.xlu0 %1065
        %1067 = vrot.lane.b32.xlu0 %v339, 111
        %v1068 = vpop.permute.xlu0 %1067
        %vm1069 = vcmask 908288
        %v1070 = vsel %vm1069, %v1062, %v1064
        %v1071 = vsel %vm1069, %v1066, %v1068
        %vm1074 = vcmask 908288
        %v1076 = vsel %vm1074, %v1064, 0
        %v1079 = vsel %vm1074, %v1068, 0
        %v1081 = vsel %vm551, %v1070, 0
        %v1082 = vsel %vm558, %v1076, 0
        %v1083 = vsel %vm551, %v1071, 0
        %v1084 = vsel %vm558, %v1079, 0
        %s1085 = scalar_lea.vmem [#allocation5], 128
        %v1086 = vld [vmem:[%s1085] sm:$0xf]
        %v1087 = vld [vmem:[%s1085 + $0x4] sm:$0xf]
        %v1088 = vld [vmem:[%s1085 + $0x8] sm:$0xf]
        %v1089 = vld [vmem:[%s1085 + $0xc] sm:$0xf]
        %v1094 = vunpack.c.l.b16 %v1086
        %v1095 = vunpack.c.l.b16 %v1087
        %v1096 = vunpack.c.l.b16 %v1088
        %v1097 = vunpack.c.l.b16 %v1089
        %v1098 = vpack.c.b16 %v1095, %v1094
        %v1099 = vpack.c.b16 %v1097, %v1096
        %v1101 = vsel %vm422, %v1098, 0
        %v1104 = vsel %vm422, %v1099, 0
        %1106 = vmatpush.bf16.msra.mxu0 0
        %1107 = vmatpush.bf16.msra.mxu0 0
        %1108 = vmatpush.bf16.msra.mxu0 0
        %1109 = vmatpush.bf16.msra.mxu0 0
        %1110 = vmatpush.bf16.msra.mxu0 0
        %1111 = vmatpush.bf16.msra.mxu0 0
        %1112 = vmatpush.bf16.msra.mxu0 %v1083
        %1113 = vmatpush.bf16.msra.mxu0 %v1081
        %1114 = vmatmul.bf16.gmra.mxu0 %v1101
        %v1115 = vpop.f32.mrf.mxu0
        %v1116 = vadd.f32 0.0, %v1115
        %v1117 = vpop.f32.mrf.mxu0
        %v1118 = vadd.f32 0.0, %v1117
        %1119 = vmatmul.bf16.gmra.mxu0 %v1104
        %v1120 = vpop.f32.mrf.mxu0
        %v1121 = vadd.f32 0.0, %v1120
        %v1122 = vpop.f32.mrf.mxu0
        %v1123 = vadd.f32 0.0, %v1122
        %1124 = vdwg.mxu0
        %1125 = vmatpush.bf16.msra.mxu0 0
        %1126 = vmatpush.bf16.msra.mxu0 0
        %1127 = vmatpush.bf16.msra.mxu0 0
        %1128 = vmatpush.bf16.msra.mxu0 0
        %1129 = vmatpush.bf16.msra.mxu0 0
        %1130 = vmatpush.bf16.msra.mxu0 0
        %1131 = vmatpush.bf16.msra.mxu0 %v1084
        %1132 = vmatpush.bf16.msra.mxu0 %v1082
        %1133 = vmatmul.bf16.gmra.mxu0 %v1101
        %v1134 = vpop.f32.mrf.mxu0
        %v1135 = vadd.f32 0.0, %v1134
        %v1136 = vpop.f32.mrf.mxu0
        %v1137 = vadd.f32 0.0, %v1136
        %1138 = vmatmul.bf16.gmra.mxu0 %v1104
        %v1139 = vpop.f32.mrf.mxu0
        %v1140 = vadd.f32 0.0, %v1139
        %v1141 = vpop.f32.mrf.mxu0
        %v1142 = vadd.f32 0.0, %v1141
        %1143 = vdwg.mxu0
        %v1144 = vadd.f32 %v1053, %v1116
        %v1145 = vadd.f32 %v1054, %v1135
        %v1146 = vadd.f32 %v1055, %v1118
        %v1147 = vadd.f32 %v1056, %v1137
        %v1148 = vadd.f32 %v1057, %v1121
        %v1149 = vadd.f32 %v1058, %v1140
        %v1150 = vadd.f32 %v1059, %v1123
        %v1151 = vadd.f32 %v1060, %v1142
        %v1152 = vld [vmem:[%s2] sm:$0xff]
        %v1153 = vld [vmem:[%s2 + $0x8] sm:$0xff]
        %v1154 = vld [vmem:[%s2 + $0x10] sm:$0xff]
        %v1155 = vld [vmem:[%s2 + $0x18] sm:$0xff]
        %1157 = vset.pattern.permute.xlu0 0
        %1158 = vperm.xlu0 %1157, %v1152
        %v1159 = vpop.permute.xlu0 %1158
        %1162 = vset.pattern.permute.xlu0 0
        %1163 = vperm.xlu0 %1162, %v1153
        %v1164 = vpop.permute.xlu0 %1163
        %1167 = vset.pattern.permute.xlu0 0
        %1168 = vperm.xlu0 %1167, %v1154
        %v1169 = vpop.permute.xlu0 %1168
        %1172 = vset.pattern.permute.xlu0 0
        %1173 = vperm.xlu0 %1172, %v1155
        %v1174 = vpop.permute.xlu0 %1173
        %v1176 = vadd.f32 %v1144, %v1159
        %v1177 = vadd.f32 %v1145, %v1159
        %v1178 = vadd.f32 %v1146, %v1164
        %v1179 = vadd.f32 %v1147, %v1164
        %v1180 = vadd.f32 %v1148, %v1169
        %v1181 = vadd.f32 %v1149, %v1169
        %v1182 = vadd.f32 %v1150, %v1174
        %v1183 = vadd.f32 %v1151, %v1174
        %v1184 = vmax.f32 %v1176, 0.0
        %v1185 = vmax.f32 %v1177, 0.0
        %v1186 = vmax.f32 %v1178, 0.0
        %v1187 = vmax.f32 %v1179, 0.0
        %v1188 = vmax.f32 %v1180, 0.0
        %v1189 = vmax.f32 %v1181, 0.0
        %v1190 = vmax.f32 %v1182, 0.0
        %v1191 = vmax.f32 %v1183, 0.0
        %v1192 = vpack.c.bf16 %v1185, %v1184
        %v1193 = vpack.c.bf16 %v1187, %v1186
        %v1194 = vpack.c.bf16 %v1189, %v1188
        %v1195 = vpack.c.bf16 %v1191, %v1190
        %v1200 = vunpack.c.l.b16 %v1192
        %v1201 = vunpack.c.h.b16 %v1192
        %v1202 = vunpack.c.l.b16 %v1193
        %v1203 = vunpack.c.h.b16 %v1193
        %v1204 = vunpack.c.l.b16 %v1194
        %v1205 = vunpack.c.h.b16 %v1194
        %v1206 = vunpack.c.l.b16 %v1195
        %v1207 = vunpack.c.h.b16 %v1195
        %v1208 = vpack.c.b16 %v1202, %v1200
        %v1209 = vpack.c.b16 %v1203, %v1201
        %v1210 = vpack.c.b16 %v1206, %v1204
        %v1211 = vpack.c.b16 %v1207, %v1205
        %1212 = vrot.lane.b32.xlu0 %v1208, 17
        %v1213 = vpop.permute.xlu0 %1212
        %1214 = vrot.lane.b32.xlu0 %v1209, 17
        %v1215 = vpop.permute.xlu0 %1214
        %1216 = vrot.lane.b32.xlu0 %v1210, 17
        %v1217 = vpop.permute.xlu0 %1216
        %1218 = vrot.lane.b32.xlu0 %v1211, 17
        %v1219 = vpop.permute.xlu0 %1218
        %v1220 = vsel %vm348, %v1213, %v1215
        %v1221 = vsel %vm348, %v1217, %v1219
        %v1225 = vsel %vm353, 0, %v1213
        %v1228 = vsel %vm353, 0, %v1217
        %v1230 = vsel %vm371, %v1225, 0
        %v1231 = vsel %vm378, %v1220, 0
        %v1232 = vsel %vm371, %v1228, 0
        %v1233 = vsel %vm378, %v1221, 0
        %v1234 = vld [vmem:[#allocation7] sm:$0xf]
        %v1235 = vld [vmem:[#allocation7 + $0x4] sm:$0xf]
        %v1236 = vld [vmem:[#allocation7 + $0x8] sm:$0xf]
        %v1237 = vld [vmem:[#allocation7 + $0xc] sm:$0xf]
        %1238 = vrot.lane.b32.xlu0 %v1208, 16
        %v1239 = vpop.permute.xlu0 %1238
        %1240 = vrot.lane.b32.xlu0 %v1209, 16
        %v1241 = vpop.permute.xlu0 %1240
        %1242 = vrot.lane.b32.xlu0 %v1210, 16
        %v1243 = vpop.permute.xlu0 %1242
        %1244 = vrot.lane.b32.xlu0 %v1211, 16
        %v1245 = vpop.permute.xlu0 %1244
        %v1246 = vsel %vm395, %v1239, %v1241
        %v1247 = vsel %vm395, %v1243, %v1245
        %v1251 = vsel %vm400, 0, %v1239
        %v1254 = vsel %vm400, 0, %v1243
        %s1256 = scalar_lea.vmem [#allocation7], 16
        %v1257 = vld [vmem:[%s1256] sm:$0xf]
        %v1258 = vld [vmem:[%s1256 + $0x4] sm:$0xf]
        %v1259 = vld [vmem:[%s1256 + $0x8] sm:$0xf]
        %v1260 = vld [vmem:[%s1256 + $0xc] sm:$0xf]
        %v1265 = vunpack.c.l.b16 %v1257
        %v1266 = vunpack.c.l.b16 %v1258
        %v1267 = vunpack.c.l.b16 %v1259
        %v1268 = vunpack.c.l.b16 %v1260
        %v1269 = vpack.c.b16 %v1266, %v1265
        %v1270 = vpack.c.b16 %v1268, %v1267
        %v1272 = vsel %vm422, %v1269, 0
        %v1275 = vsel %vm422, %v1270, 0
        %1277 = vmatpush.bf16.msra.mxu0 0
        %1278 = vmatpush.bf16.msra.mxu0 0
        %1279 = vmatpush.bf16.msra.mxu0 0
        %1280 = vmatpush.bf16.msra.mxu0 0
        %1281 = vmatpush.bf16.msra.mxu0 0
        %1282 = vmatpush.bf16.msra.mxu0 0
        %1283 = vmatpush.bf16.msra.mxu0 %v1254
        %1284 = vmatpush.bf16.msra.mxu0 %v1251
        %1285 = vmatmul.bf16.gmra.mxu0 %v1272
        %v1286 = vpop.f32.mrf.mxu0
        %v1287 = vadd.f32 0.0, %v1286
        %v1288 = vpop.f32.mrf.mxu0
        %v1289 = vadd.f32 0.0, %v1288
        %1290 = vmatmul.bf16.gmra.mxu0 %v1275
        %v1291 = vpop.f32.mrf.mxu0
        %v1292 = vadd.f32 0.0, %v1291
        %v1293 = vpop.f32.mrf.mxu0
        %v1294 = vadd.f32 0.0, %v1293
        %1295 = vdwg.mxu0
        %1296 = vmatpush.bf16.msra.mxu0 0
        %1297 = vmatpush.bf16.msra.mxu0 0
        %1298 = vmatpush.bf16.msra.mxu0 0
        %1299 = vmatpush.bf16.msra.mxu0 0
        %1300 = vmatpush.bf16.msra.mxu0 0
        %1301 = vmatpush.bf16.msra.mxu0 0
        %1302 = vmatpush.bf16.msra.mxu0 %v1247
        %1303 = vmatpush.bf16.msra.mxu0 %v1246
        %1304 = vmatmul.bf16.gmra.mxu0 %v1272
        %v1305 = vpop.f32.mrf.mxu0
        %v1306 = vadd.f32 0.0, %v1305
        %v1307 = vpop.f32.mrf.mxu0
        %v1308 = vadd.f32 0.0, %v1307
        %1309 = vmatmul.bf16.gmra.mxu0 %v1275
        %v1310 = vpop.f32.mrf.mxu0
        %v1311 = vadd.f32 0.0, %v1310
        %v1312 = vpop.f32.mrf.mxu0
        %v1313 = vadd.f32 0.0, %v1312
        %1314 = vdwg.mxu0
        %v1319 = vunpack.c.l.b16 %v1234
        %v1320 = vunpack.c.l.b16 %v1235
        %v1321 = vunpack.c.l.b16 %v1236
        %v1322 = vunpack.c.l.b16 %v1237
        %v1323 = vpack.c.b16 %v1320, %v1319
        %v1324 = vpack.c.b16 %v1322, %v1321
        %v1326 = vsel %vm422, %v1323, 0
        %v1329 = vsel %vm422, %v1324, 0
        %1331 = vmatpush.bf16.msra.mxu0 0
        %1332 = vmatpush.bf16.msra.mxu0 0
        %1333 = vmatpush.bf16.msra.mxu0 0
        %1334 = vmatpush.bf16.msra.mxu0 0
        %1335 = vmatpush.bf16.msra.mxu0 0
        %1336 = vmatpush.bf16.msra.mxu0 0
        %1337 = vmatpush.bf16.msra.mxu0 %v1232
        %1338 = vmatpush.bf16.msra.mxu0 %v1230
        %1339 = vmatmul.bf16.gmra.mxu0 %v1326
        %v1340 = vpop.f32.mrf.mxu0
        %v1341 = vadd.f32 %v1287, %v1340
        %v1342 = vpop.f32.mrf.mxu0
        %v1343 = vadd.f32 %v1289, %v1342
        %1344 = vmatmul.bf16.gmra.mxu0 %v1329
        %v1345 = vpop.f32.mrf.mxu0
        %v1346 = vadd.f32 %v1292, %v1345
        %v1347 = vpop.f32.mrf.mxu0
        %v1348 = vadd.f32 %v1294, %v1347
        %1349 = vdwg.mxu0
        %1350 = vmatpush.bf16.msra.mxu0 0
        %1351 = vmatpush.bf16.msra.mxu0 0
        %1352 = vmatpush.bf16.msra.mxu0 0
        %1353 = vmatpush.bf16.msra.mxu0 0
        %1354 = vmatpush.bf16.msra.mxu0 0
        %1355 = vmatpush.bf16.msra.mxu0 0
        %1356 = vmatpush.bf16.msra.mxu0 %v1233
        %1357 = vmatpush.bf16.msra.mxu0 %v1231
        %1358 = vmatmul.bf16.gmra.mxu0 %v1326
        %v1359 = vpop.f32.mrf.mxu0
        %v1360 = vadd.f32 %v1306, %v1359
        %v1361 = vpop.f32.mrf.mxu0
        %v1362 = vadd.f32 %v1308, %v1361
        %1363 = vmatmul.bf16.gmra.mxu0 %v1329
        %v1364 = vpop.f32.mrf.mxu0
        %v1365 = vadd.f32 %v1311, %v1364
        %v1366 = vpop.f32.mrf.mxu0
        %v1367 = vadd.f32 %v1313, %v1366
        %1368 = vdwg.mxu0
        %1369 = vrot.lane.b32.xlu0 %v1208, 15
        %v1370 = vpop.permute.xlu0 %1369
        %1371 = vrot.lane.b32.xlu0 %v1209, 15
        %v1372 = vpop.permute.xlu0 %1371
        %1373 = vrot.lane.b32.xlu0 %v1210, 15
        %v1374 = vpop.permute.xlu0 %1373
        %1375 = vrot.lane.b32.xlu0 %v1211, 15
        %v1376 = vpop.permute.xlu0 %1375
        %v1377 = vsel %vm529, %v1370, %v1372
        %v1378 = vsel %vm529, %v1374, %v1376
        %v1382 = vsel %vm534, 0, %v1370
        %v1385 = vsel %vm534, 0, %v1374
        %v1387 = vsel %vm551, %v1382, 0
        %v1388 = vsel %vm558, %v1377, 0
        %v1389 = vsel %vm551, %v1385, 0
        %v1390 = vsel %vm558, %v1378, 0
        %s1391 = scalar_lea.vmem [#allocation7], 32
        %v1392 = vld [vmem:[%s1391] sm:$0xf]
        %v1393 = vld [vmem:[%s1391 + $0x4] sm:$0xf]
        %v1394 = vld [vmem:[%s1391 + $0x8] sm:$0xf]
        %v1395 = vld [vmem:[%s1391 + $0xc] sm:$0xf]
        %v1400 = vunpack.c.l.b16 %v1392
        %v1401 = vunpack.c.l.b16 %v1393
        %v1402 = vunpack.c.l.b16 %v1394
        %v1403 = vunpack.c.l.b16 %v1395
        %v1404 = vpack.c.b16 %v1401, %v1400
        %v1405 = vpack.c.b16 %v1403, %v1402
        %v1407 = vsel %vm422, %v1404, 0
        %v1410 = vsel %vm422, %v1405, 0
        %1412 = vmatpush.bf16.msra.mxu0 0
        %1413 = vmatpush.bf16.msra.mxu0 0
        %1414 = vmatpush.bf16.msra.mxu0 0
        %1415 = vmatpush.bf16.msra.mxu0 0
        %1416 = vmatpush.bf16.msra.mxu0 0
        %1417 = vmatpush.bf16.msra.mxu0 0
        %1418 = vmatpush.bf16.msra.mxu0 %v1389
        %1419 = vmatpush.bf16.msra.mxu0 %v1387
        %1420 = vmatmul.bf16.gmra.mxu0 %v1407
        %v1421 = vpop.f32.mrf.mxu0
        %v1422 = vadd.f32 0.0, %v1421
        %v1423 = vpop.f32.mrf.mxu0
        %v1424 = vadd.f32 0.0, %v1423
        %1425 = vmatmul.bf16.gmra.mxu0 %v1410
        %v1426 = vpop.f32.mrf.mxu0
        %v1427 = vadd.f32 0.0, %v1426
        %v1428 = vpop.f32.mrf.mxu0
        %v1429 = vadd.f32 0.0, %v1428
        %1430 = vdwg.mxu0
        %1431 = vmatpush.bf16.msra.mxu0 0
        %1432 = vmatpush.bf16.msra.mxu0 0
        %1433 = vmatpush.bf16.msra.mxu0 0
        %1434 = vmatpush.bf16.msra.mxu0 0
        %1435 = vmatpush.bf16.msra.mxu0 0
        %1436 = vmatpush.bf16.msra.mxu0 0
        %1437 = vmatpush.bf16.msra.mxu0 %v1390
        %1438 = vmatpush.bf16.msra.mxu0 %v1388
        %1439 = vmatmul.bf16.gmra.mxu0 %v1407
        %v1440 = vpop.f32.mrf.mxu0
        %v1441 = vadd.f32 0.0, %v1440
        %v1442 = vpop.f32.mrf.mxu0
        %v1443 = vadd.f32 0.0, %v1442
        %1444 = vmatmul.bf16.gmra.mxu0 %v1410
        %v1445 = vpop.f32.mrf.mxu0
        %v1446 = vadd.f32 0.0, %v1445
        %v1447 = vpop.f32.mrf.mxu0
        %v1448 = vadd.f32 0.0, %v1447
        %1449 = vdwg.mxu0
        %v1450 = vadd.f32 %v1341, %v1422
        %v1451 = vadd.f32 %v1360, %v1441
        %v1452 = vadd.f32 %v1343, %v1424
        %v1453 = vadd.f32 %v1362, %v1443
        %v1454 = vadd.f32 %v1346, %v1427
        %v1455 = vadd.f32 %v1365, %v1446
        %v1456 = vadd.f32 %v1348, %v1429
        %v1457 = vadd.f32 %v1367, %v1448
        %1458 = vrot.lane.b32.xlu0 %v1208, 1
        %v1459 = vpop.permute.xlu0 %1458
        %1460 = vrot.lane.b32.xlu0 %v1209, 1
        %v1461 = vpop.permute.xlu0 %1460
        %1462 = vrot.lane.b32.xlu0 %v1210, 1
        %v1463 = vpop.permute.xlu0 %1462
        %1464 = vrot.lane.b32.xlu0 %v1211, 1
        %v1465 = vpop.permute.xlu0 %1464
        %v1466 = vsel %vm638, %v1459, %v1461
        %v1467 = vsel %vm638, %v1463, %v1465
        %v1471 = vsel %vm643, 0, %v1459
        %v1474 = vsel %vm643, 0, %v1463
        %v1476 = vsel %vm371, %v1471, 0
        %v1477 = vsel %vm378, %v1466, 0
        %v1478 = vsel %vm371, %v1474, 0
        %v1479 = vsel %vm378, %v1467, 0
        %s1480 = scalar_lea.vmem [#allocation7], 48
        %v1481 = vld [vmem:[%s1480] sm:$0xf]
        %v1482 = vld [vmem:[%s1480 + $0x4] sm:$0xf]
        %v1483 = vld [vmem:[%s1480 + $0x8] sm:$0xf]
        %v1484 = vld [vmem:[%s1480 + $0xc] sm:$0xf]
        %v1489 = vunpack.c.l.b16 %v1481
        %v1490 = vunpack.c.l.b16 %v1482
        %v1491 = vunpack.c.l.b16 %v1483
        %v1492 = vunpack.c.l.b16 %v1484
        %v1493 = vpack.c.b16 %v1490, %v1489
        %v1494 = vpack.c.b16 %v1492, %v1491
        %v1496 = vsel %vm422, %v1493, 0
        %v1499 = vsel %vm422, %v1494, 0
        %1501 = vmatpush.bf16.msra.mxu0 0
        %1502 = vmatpush.bf16.msra.mxu0 0
        %1503 = vmatpush.bf16.msra.mxu0 0
        %1504 = vmatpush.bf16.msra.mxu0 0
        %1505 = vmatpush.bf16.msra.mxu0 0
        %1506 = vmatpush.bf16.msra.mxu0 0
        %1507 = vmatpush.bf16.msra.mxu0 %v1478
        %1508 = vmatpush.bf16.msra.mxu0 %v1476
        %1509 = vmatmul.bf16.gmra.mxu0 %v1496
        %v1510 = vpop.f32.mrf.mxu0
        %v1511 = vadd.f32 0.0, %v1510
        %v1512 = vpop.f32.mrf.mxu0
        %v1513 = vadd.f32 0.0, %v1512
        %1514 = vmatmul.bf16.gmra.mxu0 %v1499
        %v1515 = vpop.f32.mrf.mxu0
        %v1516 = vadd.f32 0.0, %v1515
        %v1517 = vpop.f32.mrf.mxu0
        %v1518 = vadd.f32 0.0, %v1517
        %1519 = vdwg.mxu0
        %1520 = vmatpush.bf16.msra.mxu0 0
        %1521 = vmatpush.bf16.msra.mxu0 0
        %1522 = vmatpush.bf16.msra.mxu0 0
        %1523 = vmatpush.bf16.msra.mxu0 0
        %1524 = vmatpush.bf16.msra.mxu0 0
        %1525 = vmatpush.bf16.msra.mxu0 0
        %1526 = vmatpush.bf16.msra.mxu0 %v1479
        %1527 = vmatpush.bf16.msra.mxu0 %v1477
        %1528 = vmatmul.bf16.gmra.mxu0 %v1496
        %v1529 = vpop.f32.mrf.mxu0
        %v1530 = vadd.f32 0.0, %v1529
        %v1531 = vpop.f32.mrf.mxu0
        %v1532 = vadd.f32 0.0, %v1531
        %1533 = vmatmul.bf16.gmra.mxu0 %v1499
        %v1534 = vpop.f32.mrf.mxu0
        %v1535 = vadd.f32 0.0, %v1534
        %v1536 = vpop.f32.mrf.mxu0
        %v1537 = vadd.f32 0.0, %v1536
        %1538 = vdwg.mxu0
        %v1539 = vadd.f32 %v1450, %v1511
        %v1540 = vadd.f32 %v1451, %v1530
        %v1541 = vadd.f32 %v1452, %v1513
        %v1542 = vadd.f32 %v1453, %v1532
        %v1543 = vadd.f32 %v1454, %v1516
        %v1544 = vadd.f32 %v1455, %v1535
        %v1545 = vadd.f32 %v1456, %v1518
        %v1546 = vadd.f32 %v1457, %v1537
        %s1547 = scalar_lea.vmem [#allocation7], 64
        %v1548 = vld [vmem:[%s1547] sm:$0xf]
        %v1549 = vld [vmem:[%s1547 + $0x4] sm:$0xf]
        %v1550 = vld [vmem:[%s1547 + $0x8] sm:$0xf]
        %v1551 = vld [vmem:[%s1547 + $0xc] sm:$0xf]
        %v1556 = vunpack.c.l.b16 %v1548
        %v1557 = vunpack.c.l.b16 %v1549
        %v1558 = vunpack.c.l.b16 %v1550
        %v1559 = vunpack.c.l.b16 %v1551
        %v1560 = vpack.c.b16 %v1557, %v1556
        %v1561 = vpack.c.b16 %v1559, %v1558
        %v1567 = vsel %vm422, %v1560, 0
        %v1570 = vsel %vm422, %v1561, 0
        %1572 = vmatpush.bf16.msra.mxu0 0
        %1573 = vmatpush.bf16.msra.mxu0 0
        %1574 = vmatpush.bf16.msra.mxu0 0
        %1575 = vmatpush.bf16.msra.mxu0 0
        %1576 = vmatpush.bf16.msra.mxu0 0
        %1577 = vmatpush.bf16.msra.mxu0 0
        %1578 = vmatpush.bf16.msra.mxu0 %v1210
        %1579 = vmatpush.bf16.msra.mxu0 %v1208
        %1580 = vmatmul.bf16.gmra.mxu0 %v1567
        %v1581 = vpop.f32.mrf.mxu0
        %v1582 = vadd.f32 0.0, %v1581
        %v1583 = vpop.f32.mrf.mxu0
        %v1584 = vadd.f32 0.0, %v1583
        %1585 = vmatmul.bf16.gmra.mxu0 %v1570
        %v1586 = vpop.f32.mrf.mxu0
        %v1587 = vadd.f32 0.0, %v1586
        %v1588 = vpop.f32.mrf.mxu0
        %v1589 = vadd.f32 0.0, %v1588
        %1590 = vdwg.mxu0
        %1591 = vmatpush.bf16.msra.mxu0 0
        %1592 = vmatpush.bf16.msra.mxu0 0
        %1593 = vmatpush.bf16.msra.mxu0 0
        %1594 = vmatpush.bf16.msra.mxu0 0
        %1595 = vmatpush.bf16.msra.mxu0 0
        %1596 = vmatpush.bf16.msra.mxu0 0
        %1597 = vmatpush.bf16.msra.mxu0 %v1211
        %1598 = vmatpush.bf16.msra.mxu0 %v1209
        %1599 = vmatmul.bf16.gmra.mxu0 %v1567
        %v1600 = vpop.f32.mrf.mxu0
        %v1601 = vadd.f32 0.0, %v1600
        %v1602 = vpop.f32.mrf.mxu0
        %v1603 = vadd.f32 0.0, %v1602
        %1604 = vmatmul.bf16.gmra.mxu0 %v1570
        %v1605 = vpop.f32.mrf.mxu0
        %v1606 = vadd.f32 0.0, %v1605
        %v1607 = vpop.f32.mrf.mxu0
        %v1608 = vadd.f32 0.0, %v1607
        %1609 = vdwg.mxu0
        %v1610 = vadd.f32 %v1539, %v1582
        %v1611 = vadd.f32 %v1540, %v1601
        %v1612 = vadd.f32 %v1541, %v1584
        %v1613 = vadd.f32 %v1542, %v1603
        %v1614 = vadd.f32 %v1543, %v1587
        %v1615 = vadd.f32 %v1544, %v1606
        %v1616 = vadd.f32 %v1545, %v1589
        %v1617 = vadd.f32 %v1546, %v1608
        %1618 = vrot.lane.b32.xlu0 %v1208, 127
        %v1619 = vpop.permute.xlu0 %1618
        %1620 = vrot.lane.b32.xlu0 %v1209, 127
        %v1621 = vpop.permute.xlu0 %1620
        %1622 = vrot.lane.b32.xlu0 %v1210, 127
        %v1623 = vpop.permute.xlu0 %1622
        %1624 = vrot.lane.b32.xlu0 %v1211, 127
        %v1625 = vpop.permute.xlu0 %1624
        %v1626 = vsel %vm800, %v1619, %v1621
        %v1627 = vsel %vm800, %v1623, %v1625
        %v1631 = vsel %vm805, %v1621, 0
        %v1634 = vsel %vm805, %v1625, 0
        %v1636 = vsel %vm551, %v1626, 0
        %v1637 = vsel %vm558, %v1631, 0
        %v1638 = vsel %vm551, %v1627, 0
        %v1639 = vsel %vm558, %v1634, 0
        %s1640 = scalar_lea.vmem [#allocation7], 80
        %v1641 = vld [vmem:[%s1640] sm:$0xf]
        %v1642 = vld [vmem:[%s1640 + $0x4] sm:$0xf]
        %v1643 = vld [vmem:[%s1640 + $0x8] sm:$0xf]
        %v1644 = vld [vmem:[%s1640 + $0xc] sm:$0xf]
        %v1649 = vunpack.c.l.b16 %v1641
        %v1650 = vunpack.c.l.b16 %v1642
        %v1651 = vunpack.c.l.b16 %v1643
        %v1652 = vunpack.c.l.b16 %v1644
        %v1653 = vpack.c.b16 %v1650, %v1649
        %v1654 = vpack.c.b16 %v1652, %v1651
        %v1656 = vsel %vm422, %v1653, 0
        %v1659 = vsel %vm422, %v1654, 0
        %1661 = vmatpush.bf16.msra.mxu0 0
        %1662 = vmatpush.bf16.msra.mxu0 0
        %1663 = vmatpush.bf16.msra.mxu0 0
        %1664 = vmatpush.bf16.msra.mxu0 0
        %1665 = vmatpush.bf16.msra.mxu0 0
        %1666 = vmatpush.bf16.msra.mxu0 0
        %1667 = vmatpush.bf16.msra.mxu0 %v1638
        %1668 = vmatpush.bf16.msra.mxu0 %v1636
        %1669 = vmatmul.bf16.gmra.mxu0 %v1656
        %v1670 = vpop.f32.mrf.mxu0
        %v1671 = vadd.f32 0.0, %v1670
        %v1672 = vpop.f32.mrf.mxu0
        %v1673 = vadd.f32 0.0, %v1672
        %1674 = vmatmul.bf16.gmra.mxu0 %v1659
        %v1675 = vpop.f32.mrf.mxu0
        %v1676 = vadd.f32 0.0, %v1675
        %v1677 = vpop.f32.mrf.mxu0
        %v1678 = vadd.f32 0.0, %v1677
        %1679 = vdwg.mxu0
        %1680 = vmatpush.bf16.msra.mxu0 0
        %1681 = vmatpush.bf16.msra.mxu0 0
        %1682 = vmatpush.bf16.msra.mxu0 0
        %1683 = vmatpush.bf16.msra.mxu0 0
        %1684 = vmatpush.bf16.msra.mxu0 0
        %1685 = vmatpush.bf16.msra.mxu0 0
        %1686 = vmatpush.bf16.msra.mxu0 %v1639
        %1687 = vmatpush.bf16.msra.mxu0 %v1637
        %1688 = vmatmul.bf16.gmra.mxu0 %v1656
        %v1689 = vpop.f32.mrf.mxu0
        %v1690 = vadd.f32 0.0, %v1689
        %v1691 = vpop.f32.mrf.mxu0
        %v1692 = vadd.f32 0.0, %v1691
        %1693 = vmatmul.bf16.gmra.mxu0 %v1659
        %v1694 = vpop.f32.mrf.mxu0
        %v1695 = vadd.f32 0.0, %v1694
        %v1696 = vpop.f32.mrf.mxu0
        %v1697 = vadd.f32 0.0, %v1696
        %1698 = vdwg.mxu0
        %v1699 = vadd.f32 %v1610, %v1671
        %v1700 = vadd.f32 %v1611, %v1690
        %v1701 = vadd.f32 %v1612, %v1673
        %v1702 = vadd.f32 %v1613, %v1692
        %v1703 = vadd.f32 %v1614, %v1676
        %v1704 = vadd.f32 %v1615, %v1695
        %v1705 = vadd.f32 %v1616, %v1678
        %v1706 = vadd.f32 %v1617, %v1697
        %1707 = vrot.lane.b32.xlu0 %v1208, 113
        %v1708 = vpop.permute.xlu0 %1707
        %1709 = vrot.lane.b32.xlu0 %v1209, 113
        %v1710 = vpop.permute.xlu0 %1709
        %1711 = vrot.lane.b32.xlu0 %v1210, 113
        %v1712 = vpop.permute.xlu0 %1711
        %1713 = vrot.lane.b32.xlu0 %v1211, 113
        %v1714 = vpop.permute.xlu0 %1713
        %v1715 = vsel %vm891, %v1708, %v1710
        %v1716 = vsel %vm891, %v1712, %v1714
        %v1720 = vsel %vm896, %v1710, 0
        %v1723 = vsel %vm896, %v1714, 0
        %v1725 = vsel %vm371, %v1715, 0
        %v1726 = vsel %vm378, %v1720, 0
        %v1727 = vsel %vm371, %v1716, 0
        %v1728 = vsel %vm378, %v1723, 0
        %s1729 = scalar_lea.vmem [#allocation7], 96
        %v1730 = vld [vmem:[%s1729] sm:$0xf]
        %v1731 = vld [vmem:[%s1729 + $0x4] sm:$0xf]
        %v1732 = vld [vmem:[%s1729 + $0x8] sm:$0xf]
        %v1733 = vld [vmem:[%s1729 + $0xc] sm:$0xf]
        %v1738 = vunpack.c.l.b16 %v1730
        %v1739 = vunpack.c.l.b16 %v1731
        %v1740 = vunpack.c.l.b16 %v1732
        %v1741 = vunpack.c.l.b16 %v1733
        %v1742 = vpack.c.b16 %v1739, %v1738
        %v1743 = vpack.c.b16 %v1741, %v1740
        %v1745 = vsel %vm422, %v1742, 0
        %v1748 = vsel %vm422, %v1743, 0
        %1750 = vmatpush.bf16.msra.mxu0 0
        %1751 = vmatpush.bf16.msra.mxu0 0
        %1752 = vmatpush.bf16.msra.mxu0 0
        %1753 = vmatpush.bf16.msra.mxu0 0
        %1754 = vmatpush.bf16.msra.mxu0 0
        %1755 = vmatpush.bf16.msra.mxu0 0
        %1756 = vmatpush.bf16.msra.mxu0 %v1727
        %1757 = vmatpush.bf16.msra.mxu0 %v1725
        %1758 = vmatmul.bf16.gmra.mxu0 %v1745
        %v1759 = vpop.f32.mrf.mxu0
        %v1760 = vadd.f32 0.0, %v1759
        %v1761 = vpop.f32.mrf.mxu0
        %v1762 = vadd.f32 0.0, %v1761
        %1763 = vmatmul.bf16.gmra.mxu0 %v1748
        %v1764 = vpop.f32.mrf.mxu0
        %v1765 = vadd.f32 0.0, %v1764
        %v1766 = vpop.f32.mrf.mxu0
        %v1767 = vadd.f32 0.0, %v1766
        %1768 = vdwg.mxu0
        %1769 = vmatpush.bf16.msra.mxu0 0
        %1770 = vmatpush.bf16.msra.mxu0 0
        %1771 = vmatpush.bf16.msra.mxu0 0
        %1772 = vmatpush.bf16.msra.mxu0 0
        %1773 = vmatpush.bf16.msra.mxu0 0
        %1774 = vmatpush.bf16.msra.mxu0 0
        %1775 = vmatpush.bf16.msra.mxu0 %v1728
        %1776 = vmatpush.bf16.msra.mxu0 %v1726
        %1777 = vmatmul.bf16.gmra.mxu0 %v1745
        %v1778 = vpop.f32.mrf.mxu0
        %v1779 = vadd.f32 0.0, %v1778
        %v1780 = vpop.f32.mrf.mxu0
        %v1781 = vadd.f32 0.0, %v1780
        %1782 = vmatmul.bf16.gmra.mxu0 %v1748
        %v1783 = vpop.f32.mrf.mxu0
        %v1784 = vadd.f32 0.0, %v1783
        %v1785 = vpop.f32.mrf.mxu0
        %v1786 = vadd.f32 0.0, %v1785
        %1787 = vdwg.mxu0
        %v1788 = vadd.f32 %v1699, %v1760
        %v1789 = vadd.f32 %v1700, %v1779
        %v1790 = vadd.f32 %v1701, %v1762
        %v1791 = vadd.f32 %v1702, %v1781
        %v1792 = vadd.f32 %v1703, %v1765
        %v1793 = vadd.f32 %v1704, %v1784
        %v1794 = vadd.f32 %v1705, %v1767
        %v1795 = vadd.f32 %v1706, %v1786
        %1796 = vrot.lane.b32.xlu0 %v1208, 112
        %v1797 = vpop.permute.xlu0 %1796
        %1798 = vrot.lane.b32.xlu0 %v1209, 112
        %v1799 = vpop.permute.xlu0 %1798
        %1800 = vrot.lane.b32.xlu0 %v1210, 112
        %v1801 = vpop.permute.xlu0 %1800
        %1802 = vrot.lane.b32.xlu0 %v1211, 112
        %v1803 = vpop.permute.xlu0 %1802
        %v1804 = vsel %vm982, %v1797, %v1799
        %v1805 = vsel %vm982, %v1801, %v1803
        %v1809 = vsel %vm987, %v1799, 0
        %v1812 = vsel %vm987, %v1803, 0
        %s1814 = scalar_lea.vmem [#allocation7], 112
        %v1815 = vld [vmem:[%s1814] sm:$0xf]
        %v1816 = vld [vmem:[%s1814 + $0x4] sm:$0xf]
        %v1817 = vld [vmem:[%s1814 + $0x8] sm:$0xf]
        %v1818 = vld [vmem:[%s1814 + $0xc] sm:$0xf]
        %v1823 = vunpack.c.l.b16 %v1815
        %v1824 = vunpack.c.l.b16 %v1816
        %v1825 = vunpack.c.l.b16 %v1817
        %v1826 = vunpack.c.l.b16 %v1818
        %v1827 = vpack.c.b16 %v1824, %v1823
        %v1828 = vpack.c.b16 %v1826, %v1825
        %v1830 = vsel %vm422, %v1827, 0
        %v1833 = vsel %vm422, %v1828, 0
        %1835 = vmatpush.bf16.msra.mxu0 0
        %1836 = vmatpush.bf16.msra.mxu0 0
        %1837 = vmatpush.bf16.msra.mxu0 0
        %1838 = vmatpush.bf16.msra.mxu0 0
        %1839 = vmatpush.bf16.msra.mxu0 0
        %1840 = vmatpush.bf16.msra.mxu0 0
        %1841 = vmatpush.bf16.msra.mxu0 %v1805
        %1842 = vmatpush.bf16.msra.mxu0 %v1804
        %1843 = vmatmul.bf16.gmra.mxu0 %v1830
        %v1844 = vpop.f32.mrf.mxu0
        %v1845 = vadd.f32 0.0, %v1844
        %v1846 = vpop.f32.mrf.mxu0
        %v1847 = vadd.f32 0.0, %v1846
        %1848 = vmatmul.bf16.gmra.mxu0 %v1833
        %v1849 = vpop.f32.mrf.mxu0
        %v1850 = vadd.f32 0.0, %v1849
        %v1851 = vpop.f32.mrf.mxu0
        %v1852 = vadd.f32 0.0, %v1851
        %1853 = vdwg.mxu0
        %1854 = vmatpush.bf16.msra.mxu0 0
        %1855 = vmatpush.bf16.msra.mxu0 0
        %1856 = vmatpush.bf16.msra.mxu0 0
        %1857 = vmatpush.bf16.msra.mxu0 0
        %1858 = vmatpush.bf16.msra.mxu0 0
        %1859 = vmatpush.bf16.msra.mxu0 0
        %1860 = vmatpush.bf16.msra.mxu0 %v1812
        %1861 = vmatpush.bf16.msra.mxu0 %v1809
        %1862 = vmatmul.bf16.gmra.mxu0 %v1830
        %v1863 = vpop.f32.mrf.mxu0
        %v1864 = vadd.f32 0.0, %v1863
        %v1865 = vpop.f32.mrf.mxu0
        %v1866 = vadd.f32 0.0, %v1865
        %1867 = vmatmul.bf16.gmra.mxu0 %v1833
        %v1868 = vpop.f32.mrf.mxu0
        %v1869 = vadd.f32 0.0, %v1868
        %v1870 = vpop.f32.mrf.mxu0
        %v1871 = vadd.f32 0.0, %v1870
        %1872 = vdwg.mxu0
        %v1873 = vadd.f32 %v1788, %v1845
        %v1874 = vadd.f32 %v1789, %v1864
        %v1875 = vadd.f32 %v1790, %v1847
        %v1876 = vadd.f32 %v1791, %v1866
        %v1877 = vadd.f32 %v1792, %v1850
        %v1878 = vadd.f32 %v1793, %v1869
        %v1879 = vadd.f32 %v1794, %v1852
        %v1880 = vadd.f32 %v1795, %v1871
        %1881 = vrot.lane.b32.xlu0 %v1208, 111
        %v1882 = vpop.permute.xlu0 %1881
        %1883 = vrot.lane.b32.xlu0 %v1209, 111
        %v1884 = vpop.permute.xlu0 %1883
        %1885 = vrot.lane.b32.xlu0 %v1210, 111
        %v1886 = vpop.permute.xlu0 %1885
        %1887 = vrot.lane.b32.xlu0 %v1211, 111
        %v1888 = vpop.permute.xlu0 %1887
        %v1889 = vsel %vm1069, %v1882, %v1884
        %v1890 = vsel %vm1069, %v1886, %v1888
        %v1894 = vsel %vm1074, %v1884, 0
        %v1897 = vsel %vm1074, %v1888, 0
        %v1899 = vsel %vm551, %v1889, 0
        %v1900 = vsel %vm558, %v1894, 0
        %v1901 = vsel %vm551, %v1890, 0
        %v1902 = vsel %vm558, %v1897, 0
        %s1903 = scalar_lea.vmem [#allocation7], 128
        %v1904 = vld [vmem:[%s1903] sm:$0xf]
        %v1905 = vld [vmem:[%s1903 + $0x4] sm:$0xf]
        %v1906 = vld [vmem:[%s1903 + $0x8] sm:$0xf]
        %v1907 = vld [vmem:[%s1903 + $0xc] sm:$0xf]
        %v1912 = vunpack.c.l.b16 %v1904
        %v1913 = vunpack.c.l.b16 %v1905
        %v1914 = vunpack.c.l.b16 %v1906
        %v1915 = vunpack.c.l.b16 %v1907
        %v1916 = vpack.c.b16 %v1913, %v1912
        %v1917 = vpack.c.b16 %v1915, %v1914
        %v1919 = vsel %vm422, %v1916, 0
        %v1922 = vsel %vm422, %v1917, 0
        %1924 = vmatpush.bf16.msra.mxu0 0
        %1925 = vmatpush.bf16.msra.mxu0 0
        %1926 = vmatpush.bf16.msra.mxu0 0
        %1927 = vmatpush.bf16.msra.mxu0 0
        %1928 = vmatpush.bf16.msra.mxu0 0
        %1929 = vmatpush.bf16.msra.mxu0 0
        %1930 = vmatpush.bf16.msra.mxu0 %v1901
        %1931 = vmatpush.bf16.msra.mxu0 %v1899
        %1932 = vmatmul.bf16.gmra.mxu0 %v1919
        %v1933 = vpop.f32.mrf.mxu0
        %v1934 = vadd.f32 0.0, %v1933
        %v1935 = vpop.f32.mrf.mxu0
        %v1936 = vadd.f32 0.0, %v1935
        %1937 = vmatmul.bf16.gmra.mxu0 %v1922
        %v1938 = vpop.f32.mrf.mxu0
        %v1939 = vadd.f32 0.0, %v1938
        %v1940 = vpop.f32.mrf.mxu0
        %v1941 = vadd.f32 0.0, %v1940
        %1942 = vdwg.mxu0
        %1943 = vmatpush.bf16.msra.mxu0 0
        %1944 = vmatpush.bf16.msra.mxu0 0
        %1945 = vmatpush.bf16.msra.mxu0 0
        %1946 = vmatpush.bf16.msra.mxu0 0
        %1947 = vmatpush.bf16.msra.mxu0 0
        %1948 = vmatpush.bf16.msra.mxu0 0
        %1949 = vmatpush.bf16.msra.mxu0 %v1902
        %1950 = vmatpush.bf16.msra.mxu0 %v1900
        %1951 = vmatmul.bf16.gmra.mxu0 %v1919
        %v1952 = vpop.f32.mrf.mxu0
        %v1953 = vadd.f32 0.0, %v1952
        %v1954 = vpop.f32.mrf.mxu0
        %v1955 = vadd.f32 0.0, %v1954
        %1956 = vmatmul.bf16.gmra.mxu0 %v1922
        %v1957 = vpop.f32.mrf.mxu0
        %v1958 = vadd.f32 0.0, %v1957
        %v1959 = vpop.f32.mrf.mxu0
        %v1960 = vadd.f32 0.0, %v1959
        %1961 = vdwg.mxu0
        %v1962 = vadd.f32 %v1873, %v1934
        %v1963 = vadd.f32 %v1874, %v1953
        %v1964 = vadd.f32 %v1875, %v1936
        %v1965 = vadd.f32 %v1876, %v1955
        %v1966 = vadd.f32 %v1877, %v1939
        %v1967 = vadd.f32 %v1878, %v1958
        %v1968 = vadd.f32 %v1879, %v1941
        %v1969 = vadd.f32 %v1880, %v1960
        %v1970 = vadd.f32 %v281, %v1962
        %v1971 = vadd.f32 %v282, %v1963
        %v1972 = vadd.f32 %v283, %v1964
        %v1973 = vadd.f32 %v284, %v1965
        %v1974 = vadd.f32 %v285, %v1966
        %v1975 = vadd.f32 %v286, %v1967
        %v1976 = vadd.f32 %v287, %v1968
        %v1977 = vadd.f32 %v288, %v1969
        %v1978 = vld [vmem:[%s4] sm:$0xff]
        %v1979 = vld [vmem:[%s4 + $0x8] sm:$0xff]
        %v1980 = vld [vmem:[%s4 + $0x10] sm:$0xff]
        %v1981 = vld [vmem:[%s4 + $0x18] sm:$0xff]
        %1983 = vset.pattern.permute.xlu0 0
        %1984 = vperm.xlu0 %1983, %v1978
        %v1985 = vpop.permute.xlu0 %1984
        %1988 = vset.pattern.permute.xlu0 0
        %1989 = vperm.xlu0 %1988, %v1979
        %v1990 = vpop.permute.xlu0 %1989
        %1993 = vset.pattern.permute.xlu0 0
        %1994 = vperm.xlu0 %1993, %v1980
        %v1995 = vpop.permute.xlu0 %1994
        %1998 = vset.pattern.permute.xlu0 0
        %1999 = vperm.xlu0 %1998, %v1981
        %v2000 = vpop.permute.xlu0 %1999
        %v2002 = vadd.f32 %v1970, %v1985
        %v2003 = vadd.f32 %v1971, %v1985
        %v2004 = vadd.f32 %v1972, %v1990
        %v2005 = vadd.f32 %v1973, %v1990
        %v2006 = vadd.f32 %v1974, %v1995
        %v2007 = vadd.f32 %v1975, %v1995
        %v2008 = vadd.f32 %v1976, %v2000
        %v2009 = vadd.f32 %v1977, %v2000
        %2010 = vst [vmem:[%s277] sm:$0xff] %v2002
        %2011 = vst [vmem:[%s277 + $0x8] sm:$0xff] %v2003
        %2012 = vst [vmem:[%s277 + $0x10] sm:$0xff] %v2004
        %2013 = vst [vmem:[%s277 + $0x18] sm:$0xff] %v2005
        %2014 = vst [vmem:[%s277 + $0x20] sm:$0xff] %v2006
        %2015 = vst [vmem:[%s277 + $0x28] sm:$0xff] %v2007
        %2016 = vst [vmem:[%s277 + $0x30] sm:$0xff] %v2008
        %2017 = vst [vmem:[%s277 + $0x38] sm:$0xff] %v2009
        %s2018 = sand.u32 %s141, 1
        %s2019 = scalar_lea.sflag [#allocation4], %s2018
        %s2020 = sand.u32 %s141, 1
        %s2021 = smul.addr %s2020, 64
        %s2022 = scalar_lea.vmem [#allocation8], %s2021
        // Predicated region
        $region53: #{tpu_custom_call.1} parent=39 // pred_check
          %p2023 = pneg %p151
        $region54: #{tpu_custom_call.1} parent=39 // pred_check_branch
          %2025 = sbr.rel (%p2023) target = $region56
        $region55: #{tpu_custom_call.1} parent=39 // pred_region
          %2027 = vsyncadd %s2019, 0
          %s2028 = smul.addr %s23, 8
          %s2029 = smul.addr %s2028, 8
          %s2030 = scalar_lea.hbm %s5, %s2029
          %s2031 = sshll.u32 %s2022, 4
          %s2032 = int_to_ptr.vmem [resolvable:$true] %s2031
          %s2033 = sshll.u32 %s2030, 4
          %s2034 = int_to_ptr.hbm [resolvable:$true] %s2033
          %2039 = dma.vmem_to_hbm [thread:$0]  %s2032, 1024, %s2034, %s2019, 256, 256, 16
        $region56: #{tpu_custom_call.1} parent=39 // pred_fallthru
          _
      $region40: #{tpu_custom_call.1} parent=5 // pred_fallthru
        _
      %p2040 = scmp.le.s32.totalorder 2, %s18
      // Predicated region
      $region57: #{tpu_custom_call.1} parent=5 // pred_check
        %p2041 = pneg %p2040
      $region58: #{tpu_custom_call.1} parent=5 // pred_check_branch
        %2043 = sbr.rel (%p2041) target = $region60
      $region59: #{tpu_custom_call.1} parent=5 // pred_region
        %s2044 = ssub.s32 %s18, 2
        // Predicated region
        $region61: #{tpu_custom_call.1} parent=59 // pred_check
          %p2045 = pneg %p157
        $region62: #{tpu_custom_call.1} parent=59 // pred_check_branch
          %2047 = sbr.rel (%p2045) target = $region64
        $region63: #{tpu_custom_call.1} parent=59 // pred_region
          %s2048 = sand.u32 %s142, 1
          %s2049 = scalar_lea.sflag [#allocation4], %s2048
          %s2050 = sand.u32 %s142, 1
          %s2051 = smul.addr %s2050, 64
          %s2052 = scalar_lea.vmem [#allocation8], %s2051
          %2054 = dma.done %s2049, 1024
        $region64: #{tpu_custom_call.1} parent=59 // pred_fallthru
          _
      $region60: #{tpu_custom_call.1} parent=5 // pred_fallthru
        _
    $region6: #{tpu_custom_call.1} parent=1 // loop_footer
      %s22 = sadd.s32 1, %s18
    $region7: #{tpu_custom_call.1} parent=1 // loop_footer_branch
      %17 = sbr.rel target = $region3
    $region8: #{tpu_custom_call.1} parent=1 // loop_exit
      _
    %2055 = vsyncpa [#allocation3], 1
    %s2056 = scalar_lea.sflag [#allocation3], 1
    %2057 = vsyncpa %s2056, 1
    %2058 = vsyncpa [#allocation6], 1
    %2059 = vsyncpa [#allocation4], 1
    %s2060 = scalar_lea.sflag [#allocation4], 1
    %2061 = vsyncpa %s2060, 1

</llo_original>
